<compile_context>
chip_gen: v7x
topology: tpu7x:2x2x1
jax: 0.10.0
libtpu: 0.0.40
codegen_flags: <defaults>
</compile_context>

<pallas_src>
import functools
import math

import jax
import jax.numpy as jnp
from jax import lax
from jax.experimental import pallas as pl
from jax.experimental.pallas import tpu as pltpu


def _mha_kernel(q_ref, k_ref, v_ref,
                wq_ref, bq_ref, wk_ref, bk_ref, wv_ref, bv_ref,
                wo_ref, bo_ref,
                o_ref,
                kp_ref, vp_ref, ctx_ref,
                *, num_heads, d_k, heads_per_group, approx_recip):
    qi = pl.program_id(1)
    in_dtype = q_ref.dtype

    # ---- K/V projections: computed ONCE per batch element (qi == 0) and
    # cached in VMEM scratch in the input dtype.  The qi grid axis is
    # "arbitrary", so the scratch persists across the q-tile sweep of the
    # current batch element.
    @pl.when(qi == 0)
    def _():
        k = k_ref[0]                                              # (S, D)
        v = v_ref[0]                                              # (S, D)
        kp_ref[...] = (jnp.dot(k, wk_ref[...],
                               preferred_element_type=jnp.float32)
                       + bk_ref[0]).astype(kp_ref.dtype)
        vp_ref[...] = (jnp.dot(v, wv_ref[...],
                               preferred_element_type=jnp.float32)
                       + bv_ref[0]).astype(vp_ref.dtype)

    # ---- Q projection for this q-tile.  Fold the 1/sqrt(d_k) softmax scale
    # into the (Tq, D) projection output once (cheaper than scaling the much
    # larger (Tq, S) f32 scores per head).
    scale = 1.0 / math.sqrt(float(d_k))
    q = q_ref[0]                                                  # (Tq, D)
    qp = ((jnp.dot(q, wq_ref[...], preferred_element_type=jnp.float32)
           + bq_ref[0]) * scale).astype(in_dtype)

    kp = kp_ref[...]                                              # (S, D)
    vp = vp_ref[...]                                              # (S, D)

    # Contract the LAST dim of both q and k -> no per-head XLU transpose.
    score_dnums = (((1,), (1,)), ((), ()))

    # Static loop over head *groups*; each group covers heads_per_group*d_k
    # lanes (>=128 when d_k < 128) so the ctx store is lane-dense/aligned
    # instead of a masked sub-128-lane store per head.
    num_groups = num_heads // heads_per_group
    for g in range(num_groups):
        parts = []
        for hh in range(heads_per_group):
            h = g * heads_per_group + hh
            sl = slice(h * d_k, (h + 1) * d_k)
            qh = qp[:, sl]                                        # (Tq, d_k)
            kh = kp[:, sl]                                        # (S,  d_k)
            vh = vp[:, sl]                                        # (S,  d_k)

            scores = lax.dot_general(qh, kh, score_dnums,
                                     preferred_element_type=jnp.float32)
            # TODO(synk): the optional `mask` argument of the PyTorch forward
            # is not plumbed through (forward default is mask=None).
            scores = scores - jnp.max(scores, axis=-1, keepdims=True)
            p = jnp.exp(scores)                                   # f32 (Tq, S)
            denom = jnp.sum(p, axis=-1, keepdims=True)
            p = p * pl.reciprocal(denom, approx=approx_recip)
            parts.append(jnp.dot(p.astype(in_dtype), vh,
                                 preferred_element_type=jnp.float32))
            # NOTE: for very large S this should become an online (flash)
            # softmax over KV tiles (extra "arbitrary" grid axis or
            # pltpu.emit_pipeline) so full-S K/V and (Tq, S) scores never sit
            # in VMEM at once.
        ctx_g = parts[0] if len(parts) == 1 else jnp.concatenate(parts, axis=-1)
        gsl = slice(g * heads_per_group * d_k, (g + 1) * heads_per_group * d_k)
        ctx_ref[:, gsl] = ctx_g.astype(ctx_ref.dtype)

    # ---- Output projection: one full-width (Tq, D) x (D, D) matmul on the
    # lane-dense, input-dtype ctx slab, f32 accumulate.
    out = (jnp.dot(ctx_ref[...], wo_ref[...],
                   preferred_element_type=jnp.float32) + bo_ref[0])
    o_ref[0] = out.astype(o_ref.dtype)


def multi_head_attention(q, k, v, params, *, num_heads, block_q=None,
                         vmem_limit_bytes=None, approx_reciprocal=True):
    """q, k, v: [B, S, D]; params: dict of weights [D, D] and biases [1, D]."""
    B, S, D = q.shape
    assert D % num_heads == 0, "d_model must be divisible by num_heads"
    d_k = D // num_heads

    # Generation-aware defaults (v7x: 64 MiB VMEM / 2 TCs; v5e/v6e: 128 MiB / 1 TC).
    try:
        kind = jax.devices()[0].device_kind.lower()
    except Exception:
        kind = ""
    is_v7 = "v7" in kind
    is_128mib = any(t in kind for t in ("v5 lite", "v5e", "v6 lite", "v6e"))

    if vmem_limit_bytes is None:
        if is_v7:
            vmem_limit_bytes = 48 * 1024 * 1024   # headroom under 64 MiB physical
        elif is_128mib:
            vmem_limit_bytes = 96 * 1024 * 1024   # exploit the 128 MiB VMEM
        else:
            vmem_limit_bytes = 64 * 1024 * 1024

    # Query-tile size: bigger tiles -> fewer grid steps (~0.35 us each) and a
    # taller MXU LHS; 128-multiples keep v5e's 128-wide MXU full.  On v7x keep
    # the tile bounded so q-tile + full-S K/V + weights fit in the VMEM budget.
    if block_q is None:
        block_q = min(S, 256 if is_v7 else 512)
    block_q = min(block_q, S)
    if block_q < S:
        # (8,128) layout rule: sublane dim multiple of 8 (16 for bf16 inputs).
        mult = 16 if q.dtype == jnp.bfloat16 else 8
        block_q = max(mult, (block_q // mult) * mult)
    num_q_blocks = pl.cdiv(S, block_q)

    # Head grouping so each ctx store covers >= 128 lanes when d_k < 128.
    heads_per_group = max(1, min(num_heads, 128 // max(d_k, 1)))
    while num_heads % heads_per_group != 0:
        heads_per_group -= 1

    # Constant-index blocks are never re-fetched: single-buffer them to halve
    # their VMEM footprint versus the default double-buffering.  (K/V keep the
    # default so the next batch's DMA can overlap the current batch's tail.)
    single = pl.Buffered(1)
    q_spec = pl.BlockSpec((1, block_q, D), lambda b, qi: (b, qi, 0))
    kv_spec = pl.BlockSpec((1, S, D), lambda b, qi: (b, 0, 0))
    w_spec = pl.BlockSpec((D, D), lambda b, qi: (0, 0), pipeline_mode=single)
    b_spec = pl.BlockSpec((1, D), lambda b, qi: (0, 0), pipeline_mode=single)

    kernel = functools.partial(_mha_kernel, num_heads=num_heads, d_k=d_k,
                               heads_per_group=heads_per_group,
                               approx_recip=approx_reciprocal)

    return pl.pallas_call(
        kernel,
        out_shape=jax.ShapeDtypeStruct((B, S, D), q.dtype),
        grid_spec=pltpu.PrefetchScalarGridSpec(
            num_scalar_prefetch=0,
            grid=(B, num_q_blocks),
            in_specs=[q_spec, kv_spec, kv_spec,
                      w_spec, b_spec,   # q_linear
                      w_spec, b_spec,   # k_linear
                      w_spec, b_spec,   # v_linear
                      w_spec, b_spec],  # out_linear
            out_specs=q_spec,
            scratch_shapes=[pltpu.VMEM((S, D), q.dtype),        # cached K proj
                            pltpu.VMEM((S, D), q.dtype),        # cached V proj
                            pltpu.VMEM((block_q, D), q.dtype)], # ctx slab
        ),
        compiler_params=pltpu.CompilerParams(
            # batch axis parallel (megacore); qi must be sequential because the
            # cached K/V projections are refreshed at qi == 0 of each batch.
            dimension_semantics=("parallel", "arbitrary"),
            vmem_limit_bytes=vmem_limit_bytes),
    )(q, k, v,
      params["wq"], params["bq"],
      params["wk"], params["bk"],
      params["wv"], params["bv"],
      params["wo"], params["bo"])


def _reference_mha(q, k, v, params, *, num_heads):
    """Plain-JAX replica of the PyTorch forward, for correctness checking."""
    B, S, D = q.shape
    d_k = D // num_heads

    def proj(x, w, b):
        return x @ w + b[0]

    def split_heads(x):  # (B, S, D) -> (B, H, S, d_k)
        return x.reshape(B, S, num_heads, d_k).transpose(0, 2, 1, 3)

    qp = split_heads(proj(q, params["wq"], params["bq"]))
    kp = split_heads(proj(k, params["wk"], params["bk"]))
    vp = split_heads(proj(v, params["wv"], params["bv"]))

    scores = jnp.einsum("bhqd,bhkd->bhqk", qp, kp) / jnp.sqrt(jnp.float32(d_k))
    attn = jax.nn.softmax(scores, axis=-1)
    out = jnp.einsum("bhqk,bhkd->bhqd", attn, vp)
    out = out.transpose(0, 2, 1, 3).reshape(B, S, D)
    return proj(out, params["wo"], params["bo"])


if __name__ == "__main__":
    # Small shapes consistent with the module: d_model divisible by num_heads.
    B, S, D, H = 2, 8, 32, 4

    key = jax.random.PRNGKey(0)
    keys = jax.random.split(key, 12)

    def lin_init(kw, kb, d_in, d_out):
        # Deterministic init; [D_in, D_out] layout (transposed vs nn.Linear).
        bound = 1.0 / math.sqrt(d_in)
        w = jax.random.uniform(kw, (d_in, d_out), jnp.float32, -bound, bound)
        b = jax.random.uniform(kb, (1, d_out), jnp.float32, -bound, bound)
        return w, b

    wq, bq = lin_init(keys[0], keys[1], D, D)
    wk, bk = lin_init(keys[2], keys[3], D, D)
    wv, bv = lin_init(keys[4], keys[5], D, D)
    wo, bo = lin_init(keys[6], keys[7], D, D)
    params = dict(wq=wq, bq=bq, wk=wk, bk=bk, wv=wv, bv=bv, wo=wo, bo=bo)

    q = jax.random.normal(keys[8], (B, S, D), jnp.float32)
    k = jax.random.normal(keys[9], (B, S, D), jnp.float32)
    v = jax.random.normal(keys[10], (B, S, D), jnp.float32)

    out = multi_head_attention(q, k, v, params, num_heads=H)
    out = jax.block_until_ready(out)

    ref = _reference_mha(q, k, v, params, num_heads=H)
    assert out.shape == (B, S, D)
    # Tolerance is looser than exact-f32 because the softmax denominator uses
    # the EUP approximate reciprocal; structural bugs would give O(1) errors.
    assert jnp.allclose(out, ref, rtol=1e-2, atol=1e-2), "mismatch vs reference"

    # Also exercise the q-tiled path (block_q < S => grid=(B, 2)); this covers
    # the K/V-projection cache being reused across q-tiles of the same batch.
    S2 = 16
    q2 = jax.random.normal(keys[11], (B, S2, D), jnp.float32)
    out2 = multi_head_attention(q2, q2, q2, params, num_heads=H, block_q=8)
    out2 = jax.block_until_ready(out2)
    ref2 = _reference_mha(q2, q2, q2, params, num_heads=H)
    assert jnp.allclose(out2, ref2, rtol=1e-2, atol=1e-2), "mismatch (tiled) vs reference"

    print("KERNEL_OK")
</pallas_src>

<mosaic_0001>
module attributes {stable_mosaic.version = 11 : i64} {
  func.func @_mha_kernel(%arg0: i32, %arg1: i32, %arg2: memref<1x8x32xf32, #tpu.memory_space<vmem>>, %arg3: memref<1x8x32xf32, #tpu.memory_space<vmem>>, %arg4: memref<1x8x32xf32, #tpu.memory_space<vmem>>, %arg5: memref<32x32xf32, #tpu.memory_space<vmem>>, %arg6: memref<1x32xf32, #tpu.memory_space<vmem>>, %arg7: memref<32x32xf32, #tpu.memory_space<vmem>>, %arg8: memref<1x32xf32, #tpu.memory_space<vmem>>, %arg9: memref<32x32xf32, #tpu.memory_space<vmem>>, %arg10: memref<1x32xf32, #tpu.memory_space<vmem>>, %arg11: memref<32x32xf32, #tpu.memory_space<vmem>>, %arg12: memref<1x32xf32, #tpu.memory_space<vmem>>, %arg13: memref<1x8x32xf32, #tpu.memory_space<vmem>>, %arg14: memref<8x32xf32, #tpu.memory_space<vmem>>, %arg15: memref<8x32xf32, #tpu.memory_space<vmem>>, %arg16: memref<8x32xf32, #tpu.memory_space<vmem>>) attributes {dimension_semantics = [#tpu.dimension_semantics<parallel>, #tpu.dimension_semantics<arbitrary>], iteration_bounds = array<i64: 2, 1>, scalar_prefetch = 0 : i64, scratch_operands = 3 : i64, tpu.core_type = #tpu.core_type<tc>, window_params = [{transform_indices = @transform_0, window_bounds = array<i64: 1, 8, 32>}, {transform_indices = @transform_1, window_bounds = array<i64: 1, 8, 32>}, {transform_indices = @transform_2, window_bounds = array<i64: 1, 8, 32>}, {pipeline_mode = #tpu.pipeline_mode<synchronous>, transform_indices = @transform_3, window_bounds = array<i64: 32, 32>}, {pipeline_mode = #tpu.pipeline_mode<synchronous>, transform_indices = @transform_4, window_bounds = array<i64: 1, 32>}, {pipeline_mode = #tpu.pipeline_mode<synchronous>, transform_indices = @transform_5, window_bounds = array<i64: 32, 32>}, {pipeline_mode = #tpu.pipeline_mode<synchronous>, transform_indices = @transform_6, window_bounds = array<i64: 1, 32>}, {pipeline_mode = #tpu.pipeline_mode<synchronous>, transform_indices = @transform_7, window_bounds = array<i64: 32, 32>}, {pipeline_mode = #tpu.pipeline_mode<synchronous>, transform_indices = @transform_8, window_bounds = array<i64: 1, 32>}, {pipeline_mode = #tpu.pipeline_mode<synchronous>, transform_indices = @transform_9, window_bounds = array<i64: 32, 32>}, {pipeline_mode = #tpu.pipeline_mode<synchronous>, transform_indices = @transform_10, window_bounds = array<i64: 1, 32>}, {transform_indices = @transform_11, window_bounds = array<i64: 1, 8, 32>}]} {
    %c0_i32 = arith.constant 0 : i32
    %0 = arith.cmpi eq, %arg1, %c0_i32 : i32
    %1 = arith.extui %0 : i1 to i32
    %c0_i32_0 = arith.constant 0 : i32
    %2 = arith.cmpi ne, %1, %c0_i32_0 : i32
    scf.if %2 {
      %c0_40 = arith.constant 0 : index
      %c0_41 = arith.constant 0 : index
      %c0_42 = arith.constant 0 : index
      %89 = vector.load %arg3[%c0_40, %c0_41, %c0_42] : memref<1x8x32xf32, #tpu.memory_space<vmem>>, vector<1x8x32xf32>
      %90 = vector.shape_cast %89 : vector<1x8x32xf32> to vector<8x32xf32>
      %c0_43 = arith.constant 0 : index
      %c0_44 = arith.constant 0 : index
      %c0_45 = arith.constant 0 : index
      %91 = vector.load %arg4[%c0_43, %c0_44, %c0_45] : memref<1x8x32xf32, #tpu.memory_space<vmem>>, vector<1x8x32xf32>
      %92 = vector.shape_cast %91 : vector<1x8x32xf32> to vector<8x32xf32>
      %c0_46 = arith.constant 0 : index
      %c0_47 = arith.constant 0 : index
      %93 = vector.load %arg7[%c0_46, %c0_47] : memref<32x32xf32, #tpu.memory_space<vmem>>, vector<32x32xf32>
      %cst_48 = arith.constant dense<0.000000e+00> : vector<8x32xf32>
      %94 = tpu.matmul %90, %93, %cst_48 {dimension_numbers = #tpu.dot_dimension_numbers<[1], [0], [0], [1], [0, 0, 1, 1], [], []>} : vector<8x32xf32>, vector<32x32xf32>, vector<8x32xf32> -> vector<8x32xf32>
      %c0_49 = arith.constant 0 : index
      %c0_50 = arith.constant 0 : index
      %95 = vector.load %arg8[%c0_49, %c0_50] : memref<1x32xf32, #tpu.memory_space<vmem>>, vector<1x32xf32>
      %96 = vector.shape_cast %95 : vector<1x32xf32> to vector<32xf32>
      %97 = vector.shape_cast %96 : vector<32xf32> to vector<1x32xf32>
      %98 = vector.broadcast %97 : vector<1x32xf32> to vector<8x32xf32>
      %99 = arith.addf %94, %98 : vector<8x32xf32>
      %c0_51 = arith.constant 0 : index
      %c0_52 = arith.constant 0 : index
      %100 = vector.load %arg14[%c0_51, %c0_52] : memref<8x32xf32, #tpu.memory_space<vmem>>, vector<8x32xf32>
      tpu.vector_store %arg14[%c0_51, %c0_52], %99 {strides = array<i32>} : memref<8x32xf32, #tpu.memory_space<vmem>>, vector<8x32xf32>,
      %c0_53 = arith.constant 0 : index
      %c0_54 = arith.constant 0 : index
      %101 = vector.load %arg9[%c0_53, %c0_54] : memref<32x32xf32, #tpu.memory_space<vmem>>, vector<32x32xf32>
      %cst_55 = arith.constant dense<0.000000e+00> : vector<8x32xf32>
      %102 = tpu.matmul %92, %101, %cst_55 {dimension_numbers = #tpu.dot_dimension_numbers<[1], [0], [0], [1], [0, 0, 1, 1], [], []>} : vector<8x32xf32>, vector<32x32xf32>, vector<8x32xf32> -> vector<8x32xf32>
      %c0_56 = arith.constant 0 : index
      %c0_57 = arith.constant 0 : index
      %103 = vector.load %arg10[%c0_56, %c0_57] : memref<1x32xf32, #tpu.memory_space<vmem>>, vector<1x32xf32>
      %104 = vector.shape_cast %103 : vector<1x32xf32> to vector<32xf32>
      %105 = vector.shape_cast %104 : vector<32xf32> to vector<1x32xf32>
      %106 = vector.broadcast %105 : vector<1x32xf32> to vector<8x32xf32>
      %107 = arith.addf %102, %106 : vector<8x32xf32>
      %c0_58 = arith.constant 0 : index
      %c0_59 = arith.constant 0 : index
      %108 = vector.load %arg15[%c0_58, %c0_59] : memref<8x32xf32, #tpu.memory_space<vmem>>, vector<8x32xf32>
      tpu.vector_store %arg15[%c0_58, %c0_59], %107 {strides = array<i32>} : memref<8x32xf32, #tpu.memory_space<vmem>>, vector<8x32xf32>,
    } else {
    }
    %c0 = arith.constant 0 : index
    %c0_1 = arith.constant 0 : index
    %c0_2 = arith.constant 0 : index
    %3 = vector.load %arg2[%c0, %c0_1, %c0_2] : memref<1x8x32xf32, #tpu.memory_space<vmem>>, vector<1x8x32xf32>
    %4 = vector.shape_cast %3 : vector<1x8x32xf32> to vector<8x32xf32>
    %c0_3 = arith.constant 0 : index
    %c0_4 = arith.constant 0 : index
    %5 = vector.load %arg5[%c0_3, %c0_4] : memref<32x32xf32, #tpu.memory_space<vmem>>, vector<32x32xf32>
    %cst = arith.constant dense<0.000000e+00> : vector<8x32xf32>
    %6 = tpu.matmul %4, %5, %cst {dimension_numbers = #tpu.dot_dimension_numbers<[1], [0], [0], [1], [0, 0, 1, 1], [], []>} : vector<8x32xf32>, vector<32x32xf32>, vector<8x32xf32> -> vector<8x32xf32>
    %c0_5 = arith.constant 0 : index
    %c0_6 = arith.constant 0 : index
    %7 = vector.load %arg6[%c0_5, %c0_6] : memref<1x32xf32, #tpu.memory_space<vmem>>, vector<1x32xf32>
    %8 = vector.shape_cast %7 : vector<1x32xf32> to vector<32xf32>
    %9 = vector.shape_cast %8 : vector<32xf32> to vector<1x32xf32>
    %10 = vector.broadcast %9 : vector<1x32xf32> to vector<8x32xf32>
    %11 = arith.addf %6, %10 : vector<8x32xf32>
    %cst_7 = arith.constant 0.353553385 : f32
    %12 = vector.broadcast %cst_7 : f32 to vector<8x32xf32>
    %13 = arith.mulf %11, %12 : vector<8x32xf32>
    %c0_8 = arith.constant 0 : index
    %c0_9 = arith.constant 0 : index
    %14 = vector.load %arg14[%c0_8, %c0_9] : memref<8x32xf32, #tpu.memory_space<vmem>>, vector<8x32xf32>
    %c0_10 = arith.constant 0 : index
    %c0_11 = arith.constant 0 : index
    %15 = vector.load %arg15[%c0_10, %c0_11] : memref<8x32xf32, #tpu.memory_space<vmem>>, vector<8x32xf32>
    %16 = vector.extract_strided_slice %13 {offsets = [0, 0], sizes = [8, 8], strides = [1, 1]} : vector<8x32xf32> to vector<8x8xf32>
    %17 = vector.extract_strided_slice %14 {offsets = [0, 0], sizes = [8, 8], strides = [1, 1]} : vector<8x32xf32> to vector<8x8xf32>
    %18 = vector.extract_strided_slice %15 {offsets = [0, 0], sizes = [8, 8], strides = [1, 1]} : vector<8x32xf32> to vector<8x8xf32>
    %cst_12 = arith.constant dense<0.000000e+00> : vector<8x8xf32>
    %19 = tpu.matmul %16, %17, %cst_12 {dimension_numbers = #tpu.dot_dimension_numbers<[1], [1], [0], [0], [0, 0, 1, 0], [], []>} : vector<8x8xf32>, vector<8x8xf32>, vector<8x8xf32> -> vector<8x8xf32>
    %cst_13 = arith.constant dense<0xFF800000> : vector<8xf32>
    %20 = vector.multi_reduction <maximumf>, %19, %cst_13 [1] : vector<8x8xf32> to vector<8xf32>
    %21 = vector.shape_cast %20 : vector<8xf32> to vector<8x1xf32>
    %22 = vector.broadcast %21 : vector<8x1xf32> to vector<8x8xf32>
    %23 = arith.subf %19, %22 : vector<8x8xf32>
    %24 = math.exp %23 : vector<8x8xf32>
    %cst_14 = arith.constant dense<0.000000e+00> : vector<8xf32>
    %25 = vector.multi_reduction <add>, %24, %cst_14 [1] : vector<8x8xf32> to vector<8xf32>
    %26 = vector.shape_cast %25 : vector<8xf32> to vector<8x1xf32>
    %27 = tpu.reciprocal %26 {approx = true} : vector<8x1xf32> -> vector<8x1xf32>
    %28 = vector.broadcast %27 : vector<8x1xf32> to vector<8x8xf32>
    %29 = arith.mulf %24, %28 : vector<8x8xf32>
    %cst_15 = arith.constant dense<0.000000e+00> : vector<8x8xf32>
    %30 = tpu.matmul %29, %18, %cst_15 {dimension_numbers = #tpu.dot_dimension_numbers<[1], [0], [0], [1], [0, 0, 1, 1], [], []>} : vector<8x8xf32>, vector<8x8xf32>, vector<8x8xf32> -> vector<8x8xf32>
    %31 = vector.extract_strided_slice %13 {offsets = [0, 8], sizes = [8, 8], strides = [1, 1]} : vector<8x32xf32> to vector<8x8xf32>
    %32 = vector.extract_strided_slice %14 {offsets = [0, 8], sizes = [8, 8], strides = [1, 1]} : vector<8x32xf32> to vector<8x8xf32>
    %33 = vector.extract_strided_slice %15 {offsets = [0, 8], sizes = [8, 8], strides = [1, 1]} : vector<8x32xf32> to vector<8x8xf32>
    %cst_16 = arith.constant dense<0.000000e+00> : vector<8x8xf32>
    %34 = tpu.matmul %31, %32, %cst_16 {dimension_numbers = #tpu.dot_dimension_numbers<[1], [1], [0], [0], [0, 0, 1, 0], [], []>} : vector<8x8xf32>, vector<8x8xf32>, vector<8x8xf32> -> vector<8x8xf32>
    %cst_17 = arith.constant dense<0xFF800000> : vector<8xf32>
    %35 = vector.multi_reduction <maximumf>, %34, %cst_17 [1] : vector<8x8xf32> to vector<8xf32>
    %36 = vector.shape_cast %35 : vector<8xf32> to vector<8x1xf32>
    %37 = vector.broadcast %36 : vector<8x1xf32> to vector<8x8xf32>
    %38 = arith.subf %34, %37 : vector<8x8xf32>
    %39 = math.exp %38 : vector<8x8xf32>
    %cst_18 = arith.constant dense<0.000000e+00> : vector<8xf32>
    %40 = vector.multi_reduction <add>, %39, %cst_18 [1] : vector<8x8xf32> to vector<8xf32>
    %41 = vector.shape_cast %40 : vector<8xf32> to vector<8x1xf32>
    %42 = tpu.reciprocal %41 {approx = true} : vector<8x1xf32> -> vector<8x1xf32>
    %43 = vector.broadcast %42 : vector<8x1xf32> to vector<8x8xf32>
    %44 = arith.mulf %39, %43 : vector<8x8xf32>
    %cst_19 = arith.constant dense<0.000000e+00> : vector<8x8xf32>
    %45 = tpu.matmul %44, %33, %cst_19 {dimension_numbers = #tpu.dot_dimension_numbers<[1], [0], [0], [1], [0, 0, 1, 1], [], []>} : vector<8x8xf32>, vector<8x8xf32>, vector<8x8xf32> -> vector<8x8xf32>
    %46 = vector.extract_strided_slice %13 {offsets = [0, 16], sizes = [8, 8], strides = [1, 1]} : vector<8x32xf32> to vector<8x8xf32>
    %47 = vector.extract_strided_slice %14 {offsets = [0, 16], sizes = [8, 8], strides = [1, 1]} : vector<8x32xf32> to vector<8x8xf32>
    %48 = vector.extract_strided_slice %15 {offsets = [0, 16], sizes = [8, 8], strides = [1, 1]} : vector<8x32xf32> to vector<8x8xf32>
    %cst_20 = arith.constant dense<0.000000e+00> : vector<8x8xf32>
    %49 = tpu.matmul %46, %47, %cst_20 {dimension_numbers = #tpu.dot_dimension_numbers<[1], [1], [0], [0], [0, 0, 1, 0], [], []>} : vector<8x8xf32>, vector<8x8xf32>, vector<8x8xf32> -> vector<8x8xf32>
    %cst_21 = arith.constant dense<0xFF800000> : vector<8xf32>
    %50 = vector.multi_reduction <maximumf>, %49, %cst_21 [1] : vector<8x8xf32> to vector<8xf32>
    %51 = vector.shape_cast %50 : vector<8xf32> to vector<8x1xf32>
    %52 = vector.broadcast %51 : vector<8x1xf32> to vector<8x8xf32>
    %53 = arith.subf %49, %52 : vector<8x8xf32>
    %54 = math.exp %53 : vector<8x8xf32>
    %cst_22 = arith.constant dense<0.000000e+00> : vector<8xf32>
    %55 = vector.multi_reduction <add>, %54, %cst_22 [1] : vector<8x8xf32> to vector<8xf32>
    %56 = vector.shape_cast %55 : vector<8xf32> to vector<8x1xf32>
    %57 = tpu.reciprocal %56 {approx = true} : vector<8x1xf32> -> vector<8x1xf32>
    %58 = vector.broadcast %57 : vector<8x1xf32> to vector<8x8xf32>
    %59 = arith.mulf %54, %58 : vector<8x8xf32>
    %cst_23 = arith.constant dense<0.000000e+00> : vector<8x8xf32>
    %60 = tpu.matmul %59, %48, %cst_23 {dimension_numbers = #tpu.dot_dimension_numbers<[1], [0], [0], [1], [0, 0, 1, 1], [], []>} : vector<8x8xf32>, vector<8x8xf32>, vector<8x8xf32> -> vector<8x8xf32>
    %61 = vector.extract_strided_slice %13 {offsets = [0, 24], sizes = [8, 8], strides = [1, 1]} : vector<8x32xf32> to vector<8x8xf32>
    %62 = vector.extract_strided_slice %14 {offsets = [0, 24], sizes = [8, 8], strides = [1, 1]} : vector<8x32xf32> to vector<8x8xf32>
    %63 = vector.extract_strided_slice %15 {offsets = [0, 24], sizes = [8, 8], strides = [1, 1]} : vector<8x32xf32> to vector<8x8xf32>
    %cst_24 = arith.constant dense<0.000000e+00> : vector<8x8xf32>
    %64 = tpu.matmul %61, %62, %cst_24 {dimension_numbers = #tpu.dot_dimension_numbers<[1], [1], [0], [0], [0, 0, 1, 0], [], []>} : vector<8x8xf32>, vector<8x8xf32>, vector<8x8xf32> -> vector<8x8xf32>
    %cst_25 = arith.constant dense<0xFF800000> : vector<8xf32>
    %65 = vector.multi_reduction <maximumf>, %64, %cst_25 [1] : vector<8x8xf32> to vector<8xf32>
    %66 = vector.shape_cast %65 : vector<8xf32> to vector<8x1xf32>
    %67 = vector.broadcast %66 : vector<8x1xf32> to vector<8x8xf32>
    %68 = arith.subf %64, %67 : vector<8x8xf32>
    %69 = math.exp %68 : vector<8x8xf32>
    %cst_26 = arith.constant dense<0.000000e+00> : vector<8xf32>
    %70 = vector.multi_reduction <add>, %69, %cst_26 [1] : vector<8x8xf32> to vector<8xf32>
    %71 = vector.shape_cast %70 : vector<8xf32> to vector<8x1xf32>
    %72 = tpu.reciprocal %71 {approx = true} : vector<8x1xf32> -> vector<8x1xf32>
    %73 = vector.broadcast %72 : vector<8x1xf32> to vector<8x8xf32>
    %74 = arith.mulf %69, %73 : vector<8x8xf32>
    %cst_27 = arith.constant dense<0.000000e+00> : vector<8x8xf32>
    %75 = tpu.matmul %74, %63, %cst_27 {dimension_numbers = #tpu.dot_dimension_numbers<[1], [0], [0], [1], [0, 0, 1, 1], [], []>} : vector<8x8xf32>, vector<8x8xf32>, vector<8x8xf32> -> vector<8x8xf32>
    %76 = tpu.concatenate %30, %45, %60, %75 in 1 : vector<8x8xf32>, vector<8x8xf32>, vector<8x8xf32>, vector<8x8xf32> -> vector<8x32xf32>
    %c0_28 = arith.constant 0 : index
    %c0_29 = arith.constant 0 : index
    %77 = vector.load %arg16[%c0_28, %c0_29] : memref<8x32xf32, #tpu.memory_space<vmem>>, vector<8x32xf32>
    tpu.vector_store %arg16[%c0_28, %c0_29], %76 {strides = array<i32>} : memref<8x32xf32, #tpu.memory_space<vmem>>, vector<8x32xf32>,
    %c0_30 = arith.constant 0 : index
    %c0_31 = arith.constant 0 : index
    %78 = vector.load %arg16[%c0_30, %c0_31] : memref<8x32xf32, #tpu.memory_space<vmem>>, vector<8x32xf32>
    %c0_32 = arith.constant 0 : index
    %c0_33 = arith.constant 0 : index
    %79 = vector.load %arg11[%c0_32, %c0_33] : memref<32x32xf32, #tpu.memory_space<vmem>>, vector<32x32xf32>
    %cst_34 = arith.constant dense<0.000000e+00> : vector<8x32xf32>
    %80 = tpu.matmul %78, %79, %cst_34 {dimension_numbers = #tpu.dot_dimension_numbers<[1], [0], [0], [1], [0, 0, 1, 1], [], []>} : vector<8x32xf32>, vector<32x32xf32>, vector<8x32xf32> -> vector<8x32xf32>
    %c0_35 = arith.constant 0 : index
    %c0_36 = arith.constant 0 : index
    %81 = vector.load %arg12[%c0_35, %c0_36] : memref<1x32xf32, #tpu.memory_space<vmem>>, vector<1x32xf32>
    %82 = vector.shape_cast %81 : vector<1x32xf32> to vector<32xf32>
    %83 = vector.shape_cast %82 : vector<32xf32> to vector<1x32xf32>
    %84 = vector.broadcast %83 : vector<1x32xf32> to vector<8x32xf32>
    %85 = arith.addf %80, %84 : vector<8x32xf32>
    %c0_37 = arith.constant 0 : index
    %c0_38 = arith.constant 0 : index
    %c0_39 = arith.constant 0 : index
    %86 = vector.load %arg13[%c0_37, %c0_38, %c0_39] : memref<1x8x32xf32, #tpu.memory_space<vmem>>, vector<1x8x32xf32>
    %87 = vector.shape_cast %86 : vector<1x8x32xf32> to vector<8x32xf32>
    %88 = vector.shape_cast %85 : vector<8x32xf32> to vector<1x8x32xf32>
    tpu.vector_store %arg13[%c0_37, %c0_38, %c0_39], %88 {strides = array<i32>} : memref<1x8x32xf32, #tpu.memory_space<vmem>>, vector<1x8x32xf32>,
    return
  }
  func.func @transform_0(%arg0: i32, %arg1: i32) -> (i32, i32, i32) {
    %c0_i32 = arith.constant 0 : i32
    %c0_i32_0 = arith.constant 0 : i32
    return %arg0, %arg1, %c0_i32 : i32, i32, i32
  }
  func.func @transform_1(%arg0: i32, %arg1: i32) -> (i32, i32, i32) {
    %c0_i32 = arith.constant 0 : i32
    %c0_i32_0 = arith.constant 0 : i32
    %c0_i32_1 = arith.constant 0 : i32
    return %arg0, %c0_i32, %c0_i32_0 : i32, i32, i32
  }
  func.func @transform_2(%arg0: i32, %arg1: i32) -> (i32, i32, i32) {
    %c0_i32 = arith.constant 0 : i32
    %c0_i32_0 = arith.constant 0 : i32
    %c0_i32_1 = arith.constant 0 : i32
    return %arg0, %c0_i32, %c0_i32_0 : i32, i32, i32
  }
  func.func @transform_3(%arg0: i32, %arg1: i32) -> (i32, i32) {
    %c0_i32 = arith.constant 0 : i32
    %c0_i32_0 = arith.constant 0 : i32
    %c0_i32_1 = arith.constant 0 : i32
    return %c0_i32, %c0_i32_0 : i32, i32
  }
  func.func @transform_4(%arg0: i32, %arg1: i32) -> (i32, i32) {
    %c0_i32 = arith.constant 0 : i32
    %c0_i32_0 = arith.constant 0 : i32
    %c0_i32_1 = arith.constant 0 : i32
    return %c0_i32, %c0_i32_0 : i32, i32
  }
  func.func @transform_5(%arg0: i32, %arg1: i32) -> (i32, i32) {
    %c0_i32 = arith.constant 0 : i32
    %c0_i32_0 = arith.constant 0 : i32
    %c0_i32_1 = arith.constant 0 : i32
    return %c0_i32, %c0_i32_0 : i32, i32
  }
  func.func @transform_6(%arg0: i32, %arg1: i32) -> (i32, i32) {
    %c0_i32 = arith.constant 0 : i32
    %c0_i32_0 = arith.constant 0 : i32
    %c0_i32_1 = arith.constant 0 : i32
    return %c0_i32, %c0_i32_0 : i32, i32
  }
  func.func @transform_7(%arg0: i32, %arg1: i32) -> (i32, i32) {
    %c0_i32 = arith.constant 0 : i32
    %c0_i32_0 = arith.constant 0 : i32
    %c0_i32_1 = arith.constant 0 : i32
    return %c0_i32, %c0_i32_0 : i32, i32
  }
  func.func @transform_8(%arg0: i32, %arg1: i32) -> (i32, i32) {
    %c0_i32 = arith.constant 0 : i32
    %c0_i32_0 = arith.constant 0 : i32
    %c0_i32_1 = arith.constant 0 : i32
    return %c0_i32, %c0_i32_0 : i32, i32
  }
  func.func @transform_9(%arg0: i32, %arg1: i32) -> (i32, i32) {
    %c0_i32 = arith.constant 0 : i32
    %c0_i32_0 = arith.constant 0 : i32
    %c0_i32_1 = arith.constant 0 : i32
    return %c0_i32, %c0_i32_0 : i32, i32
  }
  func.func @transform_10(%arg0: i32, %arg1: i32) -> (i32, i32) {
    %c0_i32 = arith.constant 0 : i32
    %c0_i32_0 = arith.constant 0 : i32
    %c0_i32_1 = arith.constant 0 : i32
    return %c0_i32, %c0_i32_0 : i32, i32
  }
  func.func @transform_11(%arg0: i32, %arg1: i32) -> (i32, i32, i32) {
    %c0_i32 = arith.constant 0 : i32
    %c0_i32_0 = arith.constant 0 : i32
    return %arg0, %arg1, %c0_i32 : i32, i32, i32
  }
}

</mosaic_0001>

<llo_original>
// kernel: tpu_custom_call.1
$region0: #{tpu_custom_call.1}
  #allocation0 [shape = 'u32[]', space=smem, size = 0x4, offset = 0x4, fixed_abs, tag = 'smem constant byte address 0x4 - core index']
  #allocation1 [shape = 'u32[144,128]{1,0:T(1,128)}', space=vmem, size = 0x12000, scoped, tag = 'internal scratch']
  #allocation2 [shape = 'f32[8,32]{1,0:T(8,128)}', space=vmem, size = 0x1000, scoped, tag = 'scratch operand']
  #allocation3 [shape = 'f32[8,32]{1,0:T(8,128)}', space=vmem, size = 0x1000, scoped, tag = 'scratch operand']
  #allocation4 [shape = 'f32[8,32]{1,0:T(8,128)}', space=vmem, size = 0x1000, scoped, tag = 'scratch operand']
  %s0 = inlined_call_operand.hbm [shape: f32[2,8,32], index: 0, kind: input, shape index: {}]
  %s1 = inlined_call_operand.hbm [shape: f32[2,8,32], index: 1, kind: input, shape index: {}]
  %s2 = inlined_call_operand.hbm [shape: f32[2,8,32], index: 2, kind: input, shape index: {}]
  %s3 = inlined_call_operand.hbm [shape: f32[32,32], index: 3, kind: input, shape index: {}]
  %s4 = inlined_call_operand.hbm [shape: f32[1,32], index: 4, kind: input, shape index: {}]
  %s5 = inlined_call_operand.hbm [shape: f32[32,32], index: 5, kind: input, shape index: {}]
  %s6 = inlined_call_operand.hbm [shape: f32[1,32], index: 6, kind: input, shape index: {}]
  %s7 = inlined_call_operand.hbm [shape: f32[32,32], index: 7, kind: input, shape index: {}]
  %s8 = inlined_call_operand.hbm [shape: f32[1,32], index: 8, kind: input, shape index: {}]
  %s9 = inlined_call_operand.hbm [shape: f32[32,32], index: 9, kind: input, shape index: {}]
  %s10 = inlined_call_operand.hbm [shape: f32[1,32], index: 10, kind: input, shape index: {}]
  %s11 = inlined_call_operand.hbm [shape: f32[2,8,32], index: 11, kind: output, shape index: {}]
  %s12 = sld [smem:[#allocation0]]
  $region125: #{tpu_custom_call.1} parent=0
    _
  %s14 = ssub.s32 1, %s12
  %s15 = scalar_select 0, %s14, %s12
  $region1: #{tpu_custom_call.1} parent=0
    #allocation5 [shape = 'u8[8192]{0}', space=vmem, size = 0x2000, scoped, tag = 'input window, operand 0']
    #allocation6 [shape = 's32[2]{0}', space=sflag, size = 0x8, scoped, tag = 'scoped memory for tpu_custom_call.1']
    #allocation7 [shape = 's32[2]{0}', space=sflag, size = 0x8, scoped, tag = 'scoped memory for tpu_custom_call.1']
    #allocation8 [shape = 'u8[8192]{0}', space=vmem, size = 0x2000, scoped, tag = 'input window, operand 1']
    #allocation9 [shape = 's32[2]{0}', space=sflag, size = 0x8, scoped, tag = 'scoped memory for tpu_custom_call.1']
    #allocation10 [shape = 'u8[8192]{0}', space=vmem, size = 0x2000, scoped, tag = 'input window, operand 2']
    #allocation11 [shape = 'u8[16384]{0}', space=vmem, size = 0x4000, scoped, tag = 'input window, operand 3, single buffered']
    #allocation12 [shape = 's32[1]{0}', space=sflag, size = 0x4, scoped, tag = 'scoped memory for tpu_custom_call.1']
    #allocation13 [shape = 'u8[512]{0}', space=vmem, size = 0x400, scoped, tag = 'input window, operand 4, single buffered']
    #allocation14 [shape = 'u8[16384]{0}', space=vmem, size = 0x4000, scoped, tag = 'input window, operand 5, single buffered']
    #allocation15 [shape = 's32[1]{0}', space=sflag, size = 0x4, scoped, tag = 'scoped memory for tpu_custom_call.1']
    #allocation16 [shape = 'u8[512]{0}', space=vmem, size = 0x400, scoped, tag = 'input window, operand 6, single buffered']
    #allocation17 [shape = 'u8[16384]{0}', space=vmem, size = 0x4000, scoped, tag = 'input window, operand 7, single buffered']
    #allocation18 [shape = 's32[1]{0}', space=sflag, size = 0x4, scoped, tag = 'scoped memory for tpu_custom_call.1']
    #allocation19 [shape = 'u8[512]{0}', space=vmem, size = 0x400, scoped, tag = 'input window, operand 8, single buffered']
    #allocation20 [shape = 'u8[16384]{0}', space=vmem, size = 0x4000, scoped, tag = 'input window, operand 9, single buffered']
    #allocation21 [shape = 's32[1]{0}', space=sflag, size = 0x4, scoped, tag = 'scoped memory for tpu_custom_call.1']
    #allocation22 [shape = 'u8[512]{0}', space=vmem, size = 0x400, scoped, tag = 'input window, operand 10, single buffered']
    #allocation23 [shape = 'u8[8192]{0}', space=vmem, size = 0x2000, scoped, tag = 'output window, operand 0']
    %16 = vsyncpa [#allocation6], 0
    %s17 = scalar_lea.sflag [#allocation6], 1
    %18 = vsyncpa %s17, 0
    %19 = vsyncpa [#allocation9], 0
    %s20 = scalar_lea.sflag [#allocation9], 1
    %21 = vsyncpa %s20, 0
    %22 = vsyncpa [#allocation12], 0
    %23 = vsyncpa [#allocation15], 0
    %24 = vsyncpa [#allocation18], 0
    %25 = vsyncpa [#allocation21], 0
    %26 = vsyncpa [#allocation7], 0
    %s27 = scalar_lea.sflag [#allocation7], 1
    %28 = vsyncpa %s27, 0
    loop: start=0, step=1, limit=4
    $region2: #{tpu_custom_call.1} parent=1 // loop_pre_header
      _
    $region3: #{tpu_custom_call.1} parent=1 // loop_header
      %s30 = sphi 0, %s34
      %p31 = scmp.ge.s32.totalorder %s30, 4
      %s37 = sphi 0, %s49
      %s38 = sphi 0, %s45
      %s39 = sphi 0, %s37
      %s40 = sphi 0, %s38
      %s41 = sphi 0, %s39
      %s42 = sphi 0, %s40
      %s54 = sphi 0, %s56
      %s57 = sphi 0, %s54
      %s58 = sphi 0, %s57
      %s74 = sphi 0, %s58
      %s80 = sphi 0, %s82
      %s83 = sphi 0, %s80
      %s84 = sphi 0, %s83
      %s100 = sphi 0, %s84
      %s106 = sphi 0, %s108
      %s109 = sphi 0, %s106
      %s110 = sphi 0, %s109
      %s126 = sphi 0, %s110
      %s130 = sphi 0, %s130
      %s132 = sphi 0, %s130
      %s133 = sphi 0, %s132
      %s147 = sphi 0, %s133
      %s151 = sphi 0, %s151
      %s153 = sphi 0, %s151
      %s154 = sphi 0, %s153
      %s168 = sphi 0, %s154
      %s172 = sphi 0, %s172
      %s174 = sphi 0, %s172
      %s175 = sphi 0, %s174
      %s189 = sphi 0, %s175
      %s193 = sphi 0, %s193
      %s195 = sphi 0, %s193
      %s196 = sphi 0, %s195
      %s210 = sphi 0, %s196
      %s214 = sphi 0, %s214
      %s216 = sphi 0, %s214
      %s217 = sphi 0, %s216
      %s231 = sphi 0, %s217
      %s235 = sphi 0, %s235
      %s237 = sphi 0, %s235
      %s238 = sphi 0, %s237
      %s252 = sphi 0, %s238
      %s256 = sphi 0, %s256
      %s258 = sphi 0, %s256
      %s259 = sphi 0, %s258
      %s273 = sphi 0, %s259
      %s277 = sphi 0, %s277
      %s279 = sphi 0, %s277
      %s280 = sphi 0, %s279
      %s294 = sphi 0, %s280
      %s302 = sphi 0, %s304
      %s305 = sphi 0, %s302
      %s306 = sphi 0, %s305
      %s322 = sphi 0, %s306
    $region4: #{tpu_custom_call.1} parent=1 // loop_header_branch
      %33 = sbr.rel (%p31) target = $region8
    $region5: #{tpu_custom_call.1} parent=1 // loop_body
      %s35 = ssub.s32 %s30, 1
      %s36 = ssub.s32 %s30, 2
      %s43 = sadd.s32 1, %s38
      %p44 = scmp.ge.s32.totalorder %s43, 1
      %s45 = scalar_select %p44, 0, %s43
      %s46 = sadd.s32 1, %s37
      %s47 = scalar_select %p44, %s46, %s37
      %p48 = scmp.ge.s32.totalorder %s47, 2
      %s49 = scalar_select %p48, 0, %s47
      %s50 = ssub.s32 %s37, %s49
      %s51 = ssub.s32 %s38, %s45
      %s52 = sor.u32 %s50, %s51
      %p53 = scmp.eq.s32.totalorder %s52, 0
      %s55 = sadd.s32 %s54, 1
      %s56 = scalar_select %p53, %s54, %s55
      %p59 = pneg %p53
      %p60 = scmp.eq.s32.totalorder %s30, 1
      %p61 = por %p59, %p60
      %p62 = scmp.ne.s32.totalorder %s54, %s57
      %p63 = scmp.eq.s32.totalorder %s30, 0
      %p64 = por %p62, %p63
      %p65 = scmp.ne.s32.totalorder %s54, %s57
      %p66 = scmp.eq.s32.totalorder %s35, 1
      %p67 = por %p65, %p66
      %p68 = scmp.ne.s32.totalorder %s57, %s58
      %p69 = scmp.eq.s32.totalorder %s35, 0
      %p70 = por %p68, %p69
      %p71 = scmp.ne.s32.totalorder %s57, %s58
      %p72 = scmp.eq.s32.totalorder %s36, 1
      %p73 = por %p71, %p72
      %p75 = scmp.ne.s32.totalorder %s58, %s74
      %p76 = scmp.eq.s32.totalorder %s36, 0
      %p77 = por %p75, %p76
      %s78 = ssub.s32 %s37, %s49
      %p79 = scmp.eq.s32.totalorder %s78, 0
      %s81 = sadd.s32 %s80, 1
      %s82 = scalar_select %p79, %s80, %s81
      %p85 = pneg %p79
      %p86 = scmp.eq.s32.totalorder %s30, 1
      %p87 = por %p85, %p86
      %p88 = scmp.ne.s32.totalorder %s80, %s83
      %p89 = scmp.eq.s32.totalorder %s30, 0
      %p90 = por %p88, %p89
      %p91 = scmp.ne.s32.totalorder %s80, %s83
      %p92 = scmp.eq.s32.totalorder %s35, 1
      %p93 = por %p91, %p92
      %p94 = scmp.ne.s32.totalorder %s83, %s84
      %p95 = scmp.eq.s32.totalorder %s35, 0
      %p96 = por %p94, %p95
      %p97 = scmp.ne.s32.totalorder %s83, %s84
      %p98 = scmp.eq.s32.totalorder %s36, 1
      %p99 = por %p97, %p98
      %p101 = scmp.ne.s32.totalorder %s84, %s100
      %p102 = scmp.eq.s32.totalorder %s36, 0
      %p103 = por %p101, %p102
      %s104 = ssub.s32 %s37, %s49
      %p105 = scmp.eq.s32.totalorder %s104, 0
      %s107 = sadd.s32 %s106, 1
      %s108 = scalar_select %p105, %s106, %s107
      %p111 = pneg %p105
      %p112 = scmp.eq.s32.totalorder %s30, 1
      %p113 = por %p111, %p112
      %p114 = scmp.ne.s32.totalorder %s106, %s109
      %p115 = scmp.eq.s32.totalorder %s30, 0
      %p116 = por %p114, %p115
      %p117 = scmp.ne.s32.totalorder %s106, %s109
      %p118 = scmp.eq.s32.totalorder %s35, 1
      %p119 = por %p117, %p118
      %p120 = scmp.ne.s32.totalorder %s109, %s110
      %p121 = scmp.eq.s32.totalorder %s35, 0
      %p122 = por %p120, %p121
      %p123 = scmp.ne.s32.totalorder %s109, %s110
      %p124 = scmp.eq.s32.totalorder %s36, 1
      %p125 = por %p123, %p124
      %p127 = scmp.ne.s32.totalorder %s110, %s126
      %p128 = scmp.eq.s32.totalorder %s36, 0
      %p129 = por %p127, %p128
      %s131 = sadd.s32 %s130, 1
      %p134 = scmp.eq.s32.totalorder %s30, 1
      %p135 = scmp.ne.s32.totalorder %s130, %s132
      %p136 = scmp.eq.s32.totalorder %s30, 0
      %p137 = por %p135, %p136
      %p138 = scmp.ne.s32.totalorder %s130, %s132
      %p139 = scmp.eq.s32.totalorder %s35, 1
      %p140 = por %p138, %p139
      %p141 = scmp.ne.s32.totalorder %s132, %s133
      %p142 = scmp.eq.s32.totalorder %s35, 0
      %p143 = por %p141, %p142
      %p144 = scmp.ne.s32.totalorder %s132, %s133
      %p145 = scmp.eq.s32.totalorder %s36, 1
      %p146 = por %p144, %p145
      %p148 = scmp.ne.s32.totalorder %s133, %s147
      %p149 = scmp.eq.s32.totalorder %s36, 0
      %p150 = por %p148, %p149
      %s152 = sadd.s32 %s151, 1
      %p155 = scmp.eq.s32.totalorder %s30, 1
      %p156 = scmp.ne.s32.totalorder %s151, %s153
      %p157 = scmp.eq.s32.totalorder %s30, 0
      %p158 = por %p156, %p157
      %p159 = scmp.ne.s32.totalorder %s151, %s153
      %p160 = scmp.eq.s32.totalorder %s35, 1
      %p161 = por %p159, %p160
      %p162 = scmp.ne.s32.totalorder %s153, %s154
      %p163 = scmp.eq.s32.totalorder %s35, 0
      %p164 = por %p162, %p163
      %p165 = scmp.ne.s32.totalorder %s153, %s154
      %p166 = scmp.eq.s32.totalorder %s36, 1
      %p167 = por %p165, %p166
      %p169 = scmp.ne.s32.totalorder %s154, %s168
      %p170 = scmp.eq.s32.totalorder %s36, 0
      %p171 = por %p169, %p170
      %s173 = sadd.s32 %s172, 1
      %p176 = scmp.eq.s32.totalorder %s30, 1
      %p177 = scmp.ne.s32.totalorder %s172, %s174
      %p178 = scmp.eq.s32.totalorder %s30, 0
      %p179 = por %p177, %p178
      %p180 = scmp.ne.s32.totalorder %s172, %s174
      %p181 = scmp.eq.s32.totalorder %s35, 1
      %p182 = por %p180, %p181
      %p183 = scmp.ne.s32.totalorder %s174, %s175
      %p184 = scmp.eq.s32.totalorder %s35, 0
      %p185 = por %p183, %p184
      %p186 = scmp.ne.s32.totalorder %s174, %s175
      %p187 = scmp.eq.s32.totalorder %s36, 1
      %p188 = por %p186, %p187
      %p190 = scmp.ne.s32.totalorder %s175, %s189
      %p191 = scmp.eq.s32.totalorder %s36, 0
      %p192 = por %p190, %p191
      %s194 = sadd.s32 %s193, 1
      %p197 = scmp.eq.s32.totalorder %s30, 1
      %p198 = scmp.ne.s32.totalorder %s193, %s195
      %p199 = scmp.eq.s32.totalorder %s30, 0
      %p200 = por %p198, %p199
      %p201 = scmp.ne.s32.totalorder %s193, %s195
      %p202 = scmp.eq.s32.totalorder %s35, 1
      %p203 = por %p201, %p202
      %p204 = scmp.ne.s32.totalorder %s195, %s196
      %p205 = scmp.eq.s32.totalorder %s35, 0
      %p206 = por %p204, %p205
      %p207 = scmp.ne.s32.totalorder %s195, %s196
      %p208 = scmp.eq.s32.totalorder %s36, 1
      %p209 = por %p207, %p208
      %p211 = scmp.ne.s32.totalorder %s196, %s210
      %p212 = scmp.eq.s32.totalorder %s36, 0
      %p213 = por %p211, %p212
      %s215 = sadd.s32 %s214, 1
      %p218 = scmp.eq.s32.totalorder %s30, 1
      %p219 = scmp.ne.s32.totalorder %s214, %s216
      %p220 = scmp.eq.s32.totalorder %s30, 0
      %p221 = por %p219, %p220
      %p222 = scmp.ne.s32.totalorder %s214, %s216
      %p223 = scmp.eq.s32.totalorder %s35, 1
      %p224 = por %p222, %p223
      %p225 = scmp.ne.s32.totalorder %s216, %s217
      %p226 = scmp.eq.s32.totalorder %s35, 0
      %p227 = por %p225, %p226
      %p228 = scmp.ne.s32.totalorder %s216, %s217
      %p229 = scmp.eq.s32.totalorder %s36, 1
      %p230 = por %p228, %p229
      %p232 = scmp.ne.s32.totalorder %s217, %s231
      %p233 = scmp.eq.s32.totalorder %s36, 0
      %p234 = por %p232, %p233
      %s236 = sadd.s32 %s235, 1
      %p239 = scmp.eq.s32.totalorder %s30, 1
      %p240 = scmp.ne.s32.totalorder %s235, %s237
      %p241 = scmp.eq.s32.totalorder %s30, 0
      %p242 = por %p240, %p241
      %p243 = scmp.ne.s32.totalorder %s235, %s237
      %p244 = scmp.eq.s32.totalorder %s35, 1
      %p245 = por %p243, %p244
      %p246 = scmp.ne.s32.totalorder %s237, %s238
      %p247 = scmp.eq.s32.totalorder %s35, 0
      %p248 = por %p246, %p247
      %p249 = scmp.ne.s32.totalorder %s237, %s238
      %p250 = scmp.eq.s32.totalorder %s36, 1
      %p251 = por %p249, %p250
      %p253 = scmp.ne.s32.totalorder %s238, %s252
      %p254 = scmp.eq.s32.totalorder %s36, 0
      %p255 = por %p253, %p254
      %s257 = sadd.s32 %s256, 1
      %p260 = scmp.eq.s32.totalorder %s30, 1
      %p261 = scmp.ne.s32.totalorder %s256, %s258
      %p262 = scmp.eq.s32.totalorder %s30, 0
      %p263 = por %p261, %p262
      %p264 = scmp.ne.s32.totalorder %s256, %s258
      %p265 = scmp.eq.s32.totalorder %s35, 1
      %p266 = por %p264, %p265
      %p267 = scmp.ne.s32.totalorder %s258, %s259
      %p268 = scmp.eq.s32.totalorder %s35, 0
      %p269 = por %p267, %p268
      %p270 = scmp.ne.s32.totalorder %s258, %s259
      %p271 = scmp.eq.s32.totalorder %s36, 1
      %p272 = por %p270, %p271
      %p274 = scmp.ne.s32.totalorder %s259, %s273
      %p275 = scmp.eq.s32.totalorder %s36, 0
      %p276 = por %p274, %p275
      %s278 = sadd.s32 %s277, 1
      %p281 = scmp.eq.s32.totalorder %s30, 1
      %p282 = scmp.ne.s32.totalorder %s277, %s279
      %p283 = scmp.eq.s32.totalorder %s30, 0
      %p284 = por %p282, %p283
      %p285 = scmp.ne.s32.totalorder %s277, %s279
      %p286 = scmp.eq.s32.totalorder %s35, 1
      %p287 = por %p285, %p286
      %p288 = scmp.ne.s32.totalorder %s279, %s280
      %p289 = scmp.eq.s32.totalorder %s35, 0
      %p290 = por %p288, %p289
      %p291 = scmp.ne.s32.totalorder %s279, %s280
      %p292 = scmp.eq.s32.totalorder %s36, 1
      %p293 = por %p291, %p292
      %p295 = scmp.ne.s32.totalorder %s280, %s294
      %p296 = scmp.eq.s32.totalorder %s36, 0
      %p297 = por %p295, %p296
      %s298 = ssub.s32 %s37, %s49
      %s299 = ssub.s32 %s38, %s45
      %s300 = sor.u32 %s298, %s299
      %p301 = scmp.eq.s32.totalorder %s300, 0
      %s303 = sadd.s32 %s302, 1
      %s304 = scalar_select %p301, %s302, %s303
      %p307 = pneg %p301
      %p308 = scmp.eq.s32.totalorder %s30, 1
      %p309 = por %p307, %p308
      %p310 = scmp.ne.s32.totalorder %s302, %s305
      %p311 = scmp.eq.s32.totalorder %s30, 0
      %p312 = por %p310, %p311
      %p313 = scmp.ne.s32.totalorder %s302, %s305
      %p314 = scmp.eq.s32.totalorder %s35, 1
      %p315 = por %p313, %p314
      %p316 = scmp.ne.s32.totalorder %s305, %s306
      %p317 = scmp.eq.s32.totalorder %s35, 0
      %p318 = por %p316, %p317
      %p319 = scmp.ne.s32.totalorder %s305, %s306
      %p320 = scmp.eq.s32.totalorder %s36, 1
      %p321 = por %p319, %p320
      %p323 = scmp.ne.s32.totalorder %s306, %s322
      %p324 = scmp.eq.s32.totalorder %s36, 0
      %p325 = por %p323, %p324
      %p326 = scmp.le.s32.totalorder 1, %s30
      %p327 = scmp.lt.s32.totalorder %s30, 3
      %p328 = pnand %p326, %p327
      %p329 = pneg %p328
      // Predicated region
      $region9: #{tpu_custom_call.1} parent=5 // pred_check
        _
      $region10: #{tpu_custom_call.1} parent=5 // pred_check_branch
        %331 = sbr.rel (%p328) target = $region12
      $region11: #{tpu_custom_call.1} parent=5 // pred_region
        %s332 = ssub.s32 %s30, 1
        // Predicated region
        $region13: #{tpu_custom_call.1} parent=11 // pred_check
          %p333 = pneg %p143
        $region14: #{tpu_custom_call.1} parent=11 // pred_check_branch
          %335 = sbr.rel (%p333) target = $region16
        $region15: #{tpu_custom_call.1} parent=11 // pred_region
          %s337 = ssub.s32 512, 512
          %338 = vsyncadd [#allocation12], %s337
          %s339 = sshll.u32 [#allocation11], 4
          %s340 = int_to_ptr.vmem [resolvable:$true] %s339
          %345 = dma.hbm_to_vmem [thread:$0]  %s3, 512, %s340, [#allocation12], 128, 128, 8
        $region16: #{tpu_custom_call.1} parent=11 // pred_fallthru
          _
        // Predicated region
        $region17: #{tpu_custom_call.1} parent=11 // pred_check
          %p346 = pneg %p164
        $region18: #{tpu_custom_call.1} parent=11 // pred_check_branch
          %348 = sbr.rel (%p346) target = $region20
        $region19: #{tpu_custom_call.1} parent=11 // pred_region
          %s350 = ssub.s32 16, 16
          %351 = vsyncadd [#allocation12], %s350
          %s353 = sshll.u32 [#allocation13], 4
          %s354 = int_to_ptr.vmem [resolvable:$true] %s353
          %356 = dma.hbm_to_vmem [thread:$0]  %s4, 16, %s354, [#allocation12]
        $region20: #{tpu_custom_call.1} parent=11 // pred_fallthru
          _
        // Predicated region
        $region21: #{tpu_custom_call.1} parent=11 // pred_check
          %p357 = pneg %p185
        $region22: #{tpu_custom_call.1} parent=11 // pred_check_branch
          %359 = sbr.rel (%p357) target = $region24
        $region23: #{tpu_custom_call.1} parent=11 // pred_region
          %s361 = ssub.s32 512, 512
          %362 = vsyncadd [#allocation15], %s361
          %s363 = sshll.u32 [#allocation14], 4
          %s364 = int_to_ptr.vmem [resolvable:$true] %s363
          %369 = dma.hbm_to_vmem [thread:$0]  %s5, 512, %s364, [#allocation15], 128, 128, 8
        $region24: #{tpu_custom_call.1} parent=11 // pred_fallthru
          _
        // Predicated region
        $region25: #{tpu_custom_call.1} parent=11 // pred_check
          %p370 = pneg %p206
        $region26: #{tpu_custom_call.1} parent=11 // pred_check_branch
          %372 = sbr.rel (%p370) target = $region28
        $region27: #{tpu_custom_call.1} parent=11 // pred_region
          %s374 = ssub.s32 16, 16
          %375 = vsyncadd [#allocation15], %s374
          %s377 = sshll.u32 [#allocation16], 4
          %s378 = int_to_ptr.vmem [resolvable:$true] %s377
          %380 = dma.hbm_to_vmem [thread:$0]  %s6, 16, %s378, [#allocation15]
        $region28: #{tpu_custom_call.1} parent=11 // pred_fallthru
          _
        // Predicated region
        $region29: #{tpu_custom_call.1} parent=11 // pred_check
          %p381 = pneg %p227
        $region30: #{tpu_custom_call.1} parent=11 // pred_check_branch
          %383 = sbr.rel (%p381) target = $region32
        $region31: #{tpu_custom_call.1} parent=11 // pred_region
          %s385 = ssub.s32 512, 512
          %386 = vsyncadd [#allocation18], %s385
          %s387 = sshll.u32 [#allocation17], 4
          %s388 = int_to_ptr.vmem [resolvable:$true] %s387
          %393 = dma.hbm_to_vmem [thread:$0]  %s7, 512, %s388, [#allocation18], 128, 128, 8
        $region32: #{tpu_custom_call.1} parent=11 // pred_fallthru
          _
        // Predicated region
        $region33: #{tpu_custom_call.1} parent=11 // pred_check
          %p394 = pneg %p248
        $region34: #{tpu_custom_call.1} parent=11 // pred_check_branch
          %396 = sbr.rel (%p394) target = $region36
        $region35: #{tpu_custom_call.1} parent=11 // pred_region
          %s398 = ssub.s32 16, 16
          %399 = vsyncadd [#allocation18], %s398
          %s401 = sshll.u32 [#allocation19], 4
          %s402 = int_to_ptr.vmem [resolvable:$true] %s401
          %404 = dma.hbm_to_vmem [thread:$0]  %s8, 16, %s402, [#allocation18]
        $region36: #{tpu_custom_call.1} parent=11 // pred_fallthru
          _
        // Predicated region
        $region37: #{tpu_custom_call.1} parent=11 // pred_check
          %p405 = pneg %p269
        $region38: #{tpu_custom_call.1} parent=11 // pred_check_branch
          %407 = sbr.rel (%p405) target = $region40
        $region39: #{tpu_custom_call.1} parent=11 // pred_region
          %s409 = ssub.s32 512, 512
          %410 = vsyncadd [#allocation21], %s409
          %s411 = sshll.u32 [#allocation20], 4
          %s412 = int_to_ptr.vmem [resolvable:$true] %s411
          %417 = dma.hbm_to_vmem [thread:$0]  %s9, 512, %s412, [#allocation21], 128, 128, 8
        $region40: #{tpu_custom_call.1} parent=11 // pred_fallthru
          _
        // Predicated region
        $region41: #{tpu_custom_call.1} parent=11 // pred_check
          %p418 = pneg %p290
        $region42: #{tpu_custom_call.1} parent=11 // pred_check_branch
          %420 = sbr.rel (%p418) target = $region44
        $region43: #{tpu_custom_call.1} parent=11 // pred_region
          %s422 = ssub.s32 16, 16
          %423 = vsyncadd [#allocation21], %s422
          %s425 = sshll.u32 [#allocation22], 4
          %s426 = int_to_ptr.vmem [resolvable:$true] %s425
          %428 = dma.hbm_to_vmem [thread:$0]  %s10, 16, %s426, [#allocation21]
        $region44: #{tpu_custom_call.1} parent=11 // pred_fallthru
          _
      $region12: #{tpu_custom_call.1} parent=5 // pred_fallthru
        _
      %p429 = scmp.lt.s32.totalorder %s30, 2
      // Predicated region
      $region45: #{tpu_custom_call.1} parent=5 // pred_check
        %p430 = pneg %p429
      $region46: #{tpu_custom_call.1} parent=5 // pred_check_branch
        %432 = sbr.rel (%p430) target = $region48
      $region47: #{tpu_custom_call.1} parent=5 // pred_region
        // Predicated region
        $region49: #{tpu_custom_call.1} parent=47 // pred_check
          %p433 = pneg %p64
        $region50: #{tpu_custom_call.1} parent=47 // pred_check_branch
          %435 = sbr.rel (%p433) target = $region52
        $region51: #{tpu_custom_call.1} parent=47 // pred_region
          %s436 = sand.u32 %s54, 1
          %s437 = scalar_lea.sflag [#allocation6], %s436
          %s438 = sand.u32 %s54, 1
          %s439 = smul.addr %s438, 8
          %s440 = scalar_lea.vmem [#allocation5], %s439
          %s442 = ssub.s32 128, 128
          %443 = vsyncadd %s437, %s442
          %s444 = sadd.s32 %s38, %s37
          %s445 = smul.addr %s444, 128
          %s446 = scalar_lea.hbm %s0, %s445
          %s448 = sshll.u32 %s440, 4
          %s449 = int_to_ptr.vmem [resolvable:$true] %s448
          %451 = dma.hbm_to_vmem [thread:$0]  %s446, 128, %s449, %s437
        $region52: #{tpu_custom_call.1} parent=47 // pred_fallthru
          _
        // Predicated region
        $region53: #{tpu_custom_call.1} parent=47 // pred_check
          %p452 = pneg %p90
        $region54: #{tpu_custom_call.1} parent=47 // pred_check_branch
          %454 = sbr.rel (%p452) target = $region56
        $region55: #{tpu_custom_call.1} parent=47 // pred_region
          %s455 = sand.u32 %s30, 1
          %s456 = scalar_lea.sflag [#allocation9], %s455
          %s457 = sand.u32 %s80, 1
          %s458 = smul.addr %s457, 8
          %s459 = scalar_lea.vmem [#allocation8], %s458
          %s461 = ssub.s32 128, 128
          %462 = vsyncadd %s456, %s461
          %s463 = smul.addr %s37, 128
          %s464 = scalar_lea.hbm %s1, %s463
          %s466 = sshll.u32 %s459, 4
          %s467 = int_to_ptr.vmem [resolvable:$true] %s466
          %469 = dma.hbm_to_vmem [thread:$0]  %s464, 128, %s467, %s456
        $region56: #{tpu_custom_call.1} parent=47 // pred_fallthru
          _
        // Predicated region
        $region57: #{tpu_custom_call.1} parent=47 // pred_check
          %p470 = pneg %p116
        $region58: #{tpu_custom_call.1} parent=47 // pred_check_branch
          %472 = sbr.rel (%p470) target = $region60
        $region59: #{tpu_custom_call.1} parent=47 // pred_region
          %s473 = sand.u32 %s30, 1
          %s474 = scalar_lea.sflag [#allocation9], %s473
          %s475 = sand.u32 %s106, 1
          %s476 = smul.addr %s475, 8
          %s477 = scalar_lea.vmem [#allocation10], %s476
          %s479 = ssub.s32 128, 128
          %480 = vsyncadd %s474, %s479
          %s481 = smul.addr %s37, 128
          %s482 = scalar_lea.hbm %s2, %s481
          %s484 = sshll.u32 %s477, 4
          %s485 = int_to_ptr.vmem [resolvable:$true] %s484
          %487 = dma.hbm_to_vmem [thread:$0]  %s482, 128, %s485, %s474
        $region60: #{tpu_custom_call.1} parent=47 // pred_fallthru
          _
      $region48: #{tpu_custom_call.1} parent=5 // pred_fallthru
        _
      %p488 = scmp.le.s32.totalorder 1, %s30
      %p489 = scmp.lt.s32.totalorder %s30, 3
      %p490 = pnand %p488, %p489
      %p491 = pneg %p490
      // Predicated region
      $region61: #{tpu_custom_call.1} parent=5 // pred_check
        _
      $region62: #{tpu_custom_call.1} parent=5 // pred_check_branch
        %493 = sbr.rel (%p490) target = $region64
      $region63: #{tpu_custom_call.1} parent=5 // pred_region
        %s494 = ssub.s32 %s30, 1
        %s495 = sand.u32 %s57, 1
        %s496 = scalar_lea.sflag [#allocation6], %s495
        %s497 = sand.u32 %s57, 1
        %s498 = smul.addr %s497, 8
        %s499 = scalar_lea.vmem [#allocation5], %s498
        // Predicated region
        $region65: #{tpu_custom_call.1} parent=63 // pred_check
          %p500 = pneg %p70
        $region66: #{tpu_custom_call.1} parent=63 // pred_check_branch
          %502 = sbr.rel (%p500) target = $region68
        $region67: #{tpu_custom_call.1} parent=63 // pred_region
          %503 = dma.done %s496, 128
        $region68: #{tpu_custom_call.1} parent=63 // pred_fallthru
          _
        %s504 = sand.u32 %s35, 1
        %s505 = scalar_lea.sflag [#allocation9], %s504
        %s506 = sand.u32 %s83, 1
        %s507 = smul.addr %s506, 8
        %s508 = scalar_lea.vmem [#allocation8], %s507
        // Predicated region
        $region69: #{tpu_custom_call.1} parent=63 // pred_check
          %p509 = pneg %p96
        $region70: #{tpu_custom_call.1} parent=63 // pred_check_branch
          %511 = sbr.rel (%p509) target = $region72
        $region71: #{tpu_custom_call.1} parent=63 // pred_region
          %512 = dma.done %s505, 128
        $region72: #{tpu_custom_call.1} parent=63 // pred_fallthru
          _
        %s513 = sand.u32 %s35, 1
        %s514 = scalar_lea.sflag [#allocation9], %s513
        %s515 = sand.u32 %s109, 1
        %s516 = smul.addr %s515, 8
        %s517 = scalar_lea.vmem [#allocation10], %s516
        // Predicated region
        $region73: #{tpu_custom_call.1} parent=63 // pred_check
          %p518 = pneg %p122
        $region74: #{tpu_custom_call.1} parent=63 // pred_check_branch
          %520 = sbr.rel (%p518) target = $region76
        $region75: #{tpu_custom_call.1} parent=63 // pred_region
          %521 = dma.done %s514, 128
        $region76: #{tpu_custom_call.1} parent=63 // pred_fallthru
          _
        // Predicated region
        $region77: #{tpu_custom_call.1} parent=63 // pred_check
          %p522 = pneg %p143
        $region78: #{tpu_custom_call.1} parent=63 // pred_check_branch
          %524 = sbr.rel (%p522) target = $region80
        $region79: #{tpu_custom_call.1} parent=63 // pred_region
          %525 = dma.done [#allocation12], 512
        $region80: #{tpu_custom_call.1} parent=63 // pred_fallthru
          _
        // Predicated region
        $region81: #{tpu_custom_call.1} parent=63 // pred_check
          %p526 = pneg %p164
        $region82: #{tpu_custom_call.1} parent=63 // pred_check_branch
          %528 = sbr.rel (%p526) target = $region84
        $region83: #{tpu_custom_call.1} parent=63 // pred_region
          %529 = dma.done [#allocation12], 16
        $region84: #{tpu_custom_call.1} parent=63 // pred_fallthru
          _
        // Predicated region
        $region85: #{tpu_custom_call.1} parent=63 // pred_check
          %p530 = pneg %p185
        $region86: #{tpu_custom_call.1} parent=63 // pred_check_branch
          %532 = sbr.rel (%p530) target = $region88
        $region87: #{tpu_custom_call.1} parent=63 // pred_region
          %533 = dma.done [#allocation15], 512
        $region88: #{tpu_custom_call.1} parent=63 // pred_fallthru
          _
        // Predicated region
        $region89: #{tpu_custom_call.1} parent=63 // pred_check
          %p534 = pneg %p206
        $region90: #{tpu_custom_call.1} parent=63 // pred_check_branch
          %536 = sbr.rel (%p534) target = $region92
        $region91: #{tpu_custom_call.1} parent=63 // pred_region
          %537 = dma.done [#allocation15], 16
        $region92: #{tpu_custom_call.1} parent=63 // pred_fallthru
          _
        // Predicated region
        $region93: #{tpu_custom_call.1} parent=63 // pred_check
          %p538 = pneg %p227
        $region94: #{tpu_custom_call.1} parent=63 // pred_check_branch
          %540 = sbr.rel (%p538) target = $region96
        $region95: #{tpu_custom_call.1} parent=63 // pred_region
          %541 = dma.done [#allocation18], 512
        $region96: #{tpu_custom_call.1} parent=63 // pred_fallthru
          _
        // Predicated region
        $region97: #{tpu_custom_call.1} parent=63 // pred_check
          %p542 = pneg %p248
        $region98: #{tpu_custom_call.1} parent=63 // pred_check_branch
          %544 = sbr.rel (%p542) target = $region100
        $region99: #{tpu_custom_call.1} parent=63 // pred_region
          %545 = dma.done [#allocation18], 16
        $region100: #{tpu_custom_call.1} parent=63 // pred_fallthru
          _
        // Predicated region
        $region101: #{tpu_custom_call.1} parent=63 // pred_check
          %p546 = pneg %p269
        $region102: #{tpu_custom_call.1} parent=63 // pred_check_branch
          %548 = sbr.rel (%p546) target = $region104
        $region103: #{tpu_custom_call.1} parent=63 // pred_region
          %549 = dma.done [#allocation21], 512
        $region104: #{tpu_custom_call.1} parent=63 // pred_fallthru
          _
        // Predicated region
        $region105: #{tpu_custom_call.1} parent=63 // pred_check
          %p550 = pneg %p290
        $region106: #{tpu_custom_call.1} parent=63 // pred_check_branch
          %552 = sbr.rel (%p550) target = $region108
        $region107: #{tpu_custom_call.1} parent=63 // pred_region
          %553 = dma.done [#allocation21], 16
        $region108: #{tpu_custom_call.1} parent=63 // pred_fallthru
          _
        %s554 = sand.u32 %s57, 1
        %s555 = scalar_lea.sflag [#allocation6], %s554
        %s556 = sand.u32 %s57, 1
        %s557 = smul.addr %s556, 8
        %s558 = scalar_lea.vmem [#allocation5], %s557
        %p559 = pneg %p70
        %p560 = pneg %p67
        %s561 = sand.u32 %s35, 1
        %s562 = scalar_lea.sflag [#allocation9], %s561
        %s563 = sand.u32 %s83, 1
        %s564 = smul.addr %s563, 8
        %s565 = scalar_lea.vmem [#allocation8], %s564
        %p566 = pneg %p96
        %p567 = pneg %p93
        %s568 = sand.u32 %s35, 1
        %s569 = scalar_lea.sflag [#allocation9], %s568
        %s570 = sand.u32 %s109, 1
        %s571 = smul.addr %s570, 8
        %s572 = scalar_lea.vmem [#allocation10], %s571
        %p573 = pneg %p122
        %p574 = pneg %p119
        %p575 = pneg %p143
        %p576 = pneg %p140
        %p577 = pneg %p164
        %p578 = pneg %p161
        %p579 = pneg %p185
        %p580 = pneg %p182
        %p581 = pneg %p206
        %p582 = pneg %p203
        %p583 = pneg %p227
        %p584 = pneg %p224
        %p585 = pneg %p248
        %p586 = pneg %p245
        %p587 = pneg %p269
        %p588 = pneg %p266
        %p589 = pneg %p290
        %p590 = pneg %p287
        %p591 = pneg %p318
        %p592 = pneg %p315
        %s593 = sand.u32 %s305, 1
        %s594 = scalar_lea.sflag [#allocation7], %s593
        %s595 = sand.u32 %s305, 1
        %s596 = smul.addr %s595, 8
        %s597 = scalar_lea.vmem [#allocation23], %s596
        %p598 = scmp.eq.s32.totalorder %s40, 0
        // Predicated region
        $region109: #{tpu_custom_call.1} parent=63 // pred_check
          %p599 = pneg %p598
        $region110: #{tpu_custom_call.1} parent=63 // pred_check_branch
          %601 = sbr.rel (%p599) target = $region112
        $region111: #{tpu_custom_call.1} parent=63 // pred_region
          %v602 = vld [vmem:[%s508] sm:$0xff]
          %v603 = vld [vmem:[%s517] sm:$0xff]
          %v604 = vld [vmem:[#allocation14] sm:$0xff]
          %v605 = vld [vmem:[#allocation14 + $0x8] sm:$0xff]
          %v606 = vld [vmem:[#allocation14 + $0x10] sm:$0xff]
          %v607 = vld [vmem:[#allocation14 + $0x18] sm:$0xff]
          %v608 = vld [vmem:[#allocation16] sm:$0x1]
          %v610 = vlaneseq
          %v611 = vshrl.u32 %v610, 7
          %v612 = vsub.s32 0, %v611
          %v613 = vrot.slane %v608, %v612
          %vm615 = vcmask 261120
          %v617 = vsel %vm615, %v602, 0
          %619 = vmatprep.subr.mxu0 0.0
          %620 = vmatpush1.msra.mxu0 %v604
          %621 = vmatprep.subr.mxu0 0.0
          %622 = vmatpush1.msra.mxu0 %v605
          %623 = vmatprep.subr.mxu0 0.0
          %624 = vmatpush1.msra.mxu0 %v606
          %625 = vmatprep.subr.mxu0 0.0
          %626 = vmatpush1.msra.mxu0 %v607
          %627 = vmatprep.subr.mxu0 0.0
          %628 = vmatpush1.msra.mxu0 0.0
          %629 = vmatprep.subr.mxu0 0.0
          %630 = vmatpush1.msra.mxu0 0.0
          %631 = vmatprep.subr.mxu0 0.0
          %632 = vmatpush1.msra.mxu0 0.0
          %633 = vmatprep.subr.mxu0 0.0
          %634 = vmatpush1.msra.mxu0 0.0
          %635 = vmatprep.subr.mxu0 0.0
          %636 = vmatpush1.msra.mxu0 0.0
          %637 = vmatprep.subr.mxu0 0.0
          %638 = vmatpush1.msra.mxu0 0.0
          %639 = vmatprep.subr.mxu0 0.0
          %640 = vmatpush1.msra.mxu0 0.0
          %641 = vmatprep.subr.mxu0 0.0
          %642 = vmatpush1.msra.mxu0 0.0
          %643 = vmatprep.subr.mxu0 0.0
          %644 = vmatpush1.msra.mxu0 0.0
          %645 = vmatprep.subr.mxu0 0.0
          %646 = vmatpush1.msra.mxu0 0.0
          %647 = vmatprep.subr.mxu0 0.0
          %648 = vmatpush1.msra.mxu0 0.0
          %649 = vmatprep.subr.mxu0 0.0
          %650 = vmatpush1.msra.mxu0 0.0
          %651 = vmatprep.subr.mxu0 0.0
          %652 = vmatpush1.msra.mxu0 0.0
          %653 = vmatprep.subr.mxu0 0.0
          %654 = vmatpush1.msra.mxu0 0.0
          %655 = vmatprep.subr.mxu0 0.0
          %656 = vmatpush1.msra.mxu0 0.0
          %657 = vmatprep.subr.mxu0 0.0
          %658 = vmatpush1.msra.mxu0 0.0
          %659 = vmatprep.subr.mxu0 0.0
          %660 = vmatpush1.msra.mxu0 0.0
          %661 = vmatprep.subr.mxu0 0.0
          %662 = vmatpush1.msra.mxu0 0.0
          %663 = vmatprep.subr.mxu0 0.0
          %664 = vmatpush1.msra.mxu0 0.0
          %665 = vmatprep.subr.mxu0 0.0
          %666 = vmatpush1.msra.mxu0 0.0
          %667 = vmatprep.subr.mxu0 0.0
          %668 = vmatpush1.msra.mxu0 0.0
          %669 = vmatprep.subr.mxu0 0.0
          %670 = vmatpush1.msra.mxu0 0.0
          %671 = vmatprep.subr.mxu0 0.0
          %672 = vmatpush1.msra.mxu0 0.0
          %673 = vmatprep.subr.mxu0 0.0
          %674 = vmatpush1.msra.mxu0 0.0
          %675 = vmatprep.subr.mxu0 0.0
          %676 = vmatpush1.msra.mxu0 0.0
          %677 = vmatprep.subr.mxu0 0.0
          %678 = vmatpush1.msra.mxu0 0.0
          %679 = vmatprep.subr.mxu0 0.0
          %680 = vmatpush1.msra.mxu0 0.0
          %681 = vmatprep.subr.mxu0 0.0
          %682 = vmatpush1.msra.mxu0 0.0
          %683 = vmatprep.mubr.f32.mxu0 0.0
          %684 = vmatmul.mubr.f32.gmra.mrb[0].mxu0 %v617
          %v685 = vpop.f32.mrb[0].mxu0
          %v686 = vadd.f32 %v613, %v685
          %v687 = vpop.f32.mrb[0].mxu0
          %688 = vdwg.mxu0
          %689 = vst.msk [vmem:[#allocation2] sm:$0xff] %vm615, %v686
          %v690 = vld [vmem:[#allocation17] sm:$0xff]
          %v691 = vld [vmem:[#allocation17 + $0x8] sm:$0xff]
          %v692 = vld [vmem:[#allocation17 + $0x10] sm:$0xff]
          %v693 = vld [vmem:[#allocation17 + $0x18] sm:$0xff]
          %v694 = vld [vmem:[#allocation19] sm:$0x1]
          %v696 = vlaneseq
          %v697 = vshrl.u32 %v696, 7
          %v698 = vsub.s32 0, %v697
          %v699 = vrot.slane %v694, %v698
          %v702 = vsel %vm615, %v603, 0
          %704 = vmatprep.subr.mxu0 0.0
          %705 = vmatpush1.msra.mxu0 %v690
          %706 = vmatprep.subr.mxu0 0.0
          %707 = vmatpush1.msra.mxu0 %v691
          %708 = vmatprep.subr.mxu0 0.0
          %709 = vmatpush1.msra.mxu0 %v692
          %710 = vmatprep.subr.mxu0 0.0
          %711 = vmatpush1.msra.mxu0 %v693
          %712 = vmatprep.subr.mxu0 0.0
          %713 = vmatpush1.msra.mxu0 0.0
          %714 = vmatprep.subr.mxu0 0.0
          %715 = vmatpush1.msra.mxu0 0.0
          %716 = vmatprep.subr.mxu0 0.0
          %717 = vmatpush1.msra.mxu0 0.0
          %718 = vmatprep.subr.mxu0 0.0
          %719 = vmatpush1.msra.mxu0 0.0
          %720 = vmatprep.subr.mxu0 0.0
          %721 = vmatpush1.msra.mxu0 0.0
          %722 = vmatprep.subr.mxu0 0.0
          %723 = vmatpush1.msra.mxu0 0.0
          %724 = vmatprep.subr.mxu0 0.0
          %725 = vmatpush1.msra.mxu0 0.0
          %726 = vmatprep.subr.mxu0 0.0
          %727 = vmatpush1.msra.mxu0 0.0
          %728 = vmatprep.subr.mxu0 0.0
          %729 = vmatpush1.msra.mxu0 0.0
          %730 = vmatprep.subr.mxu0 0.0
          %731 = vmatpush1.msra.mxu0 0.0
          %732 = vmatprep.subr.mxu0 0.0
          %733 = vmatpush1.msra.mxu0 0.0
          %734 = vmatprep.subr.mxu0 0.0
          %735 = vmatpush1.msra.mxu0 0.0
          %736 = vmatprep.subr.mxu0 0.0
          %737 = vmatpush1.msra.mxu0 0.0
          %738 = vmatprep.subr.mxu0 0.0
          %739 = vmatpush1.msra.mxu0 0.0
          %740 = vmatprep.subr.mxu0 0.0
          %741 = vmatpush1.msra.mxu0 0.0
          %742 = vmatprep.subr.mxu0 0.0
          %743 = vmatpush1.msra.mxu0 0.0
          %744 = vmatprep.subr.mxu0 0.0
          %745 = vmatpush1.msra.mxu0 0.0
          %746 = vmatprep.subr.mxu0 0.0
          %747 = vmatpush1.msra.mxu0 0.0
          %748 = vmatprep.subr.mxu0 0.0
          %749 = vmatpush1.msra.mxu0 0.0
          %750 = vmatprep.subr.mxu0 0.0
          %751 = vmatpush1.msra.mxu0 0.0
          %752 = vmatprep.subr.mxu0 0.0
          %753 = vmatpush1.msra.mxu0 0.0
          %754 = vmatprep.subr.mxu0 0.0
          %755 = vmatpush1.msra.mxu0 0.0
          %756 = vmatprep.subr.mxu0 0.0
          %757 = vmatpush1.msra.mxu0 0.0
          %758 = vmatprep.subr.mxu0 0.0
          %759 = vmatpush1.msra.mxu0 0.0
          %760 = vmatprep.subr.mxu0 0.0
          %761 = vmatpush1.msra.mxu0 0.0
          %762 = vmatprep.subr.mxu0 0.0
          %763 = vmatpush1.msra.mxu0 0.0
          %764 = vmatprep.subr.mxu0 0.0
          %765 = vmatpush1.msra.mxu0 0.0
          %766 = vmatprep.subr.mxu0 0.0
          %767 = vmatpush1.msra.mxu0 0.0
          %768 = vmatprep.mubr.f32.mxu0 0.0
          %769 = vmatmul.mubr.f32.gmra.mrb[0].mxu0 %v702
          %v770 = vpop.f32.mrb[0].mxu0
          %v771 = vadd.f32 %v699, %v770
          %v772 = vpop.f32.mrb[0].mxu0
          %773 = vdwg.mxu0
          %774 = vst.msk [vmem:[#allocation3] sm:$0xff] %vm615, %v771
        $region112: #{tpu_custom_call.1} parent=63 // pred_fallthru
          _
        %v775 = vld [vmem:[%s499] sm:$0xff]
        %v776 = vld [vmem:[#allocation11] sm:$0xff]
        %v777 = vld [vmem:[#allocation11 + $0x8] sm:$0xff]
        %v778 = vld [vmem:[#allocation11 + $0x10] sm:$0xff]
        %v779 = vld [vmem:[#allocation11 + $0x18] sm:$0xff]
        %v780 = vld [vmem:[#allocation13] sm:$0x1]
        %v782 = vlaneseq
        %v783 = vshrl.u32 %v782, 7
        %v784 = vsub.s32 0, %v783
        %v785 = vrot.slane %v780, %v784
        %vm787 = vcmask 261120
        %v789 = vsel %vm787, %v775, 0
        %791 = vmatprep.subr.mxu0 0.0
        %792 = vmatpush1.msra.mxu0 %v776
        %793 = vmatprep.subr.mxu0 0.0
        %794 = vmatpush1.msra.mxu0 %v777
        %795 = vmatprep.subr.mxu0 0.0
        %796 = vmatpush1.msra.mxu0 %v778
        %797 = vmatprep.subr.mxu0 0.0
        %798 = vmatpush1.msra.mxu0 %v779
        %799 = vmatprep.subr.mxu0 0.0
        %800 = vmatpush1.msra.mxu0 0.0
        %801 = vmatprep.subr.mxu0 0.0
        %802 = vmatpush1.msra.mxu0 0.0
        %803 = vmatprep.subr.mxu0 0.0
        %804 = vmatpush1.msra.mxu0 0.0
        %805 = vmatprep.subr.mxu0 0.0
        %806 = vmatpush1.msra.mxu0 0.0
        %807 = vmatprep.subr.mxu0 0.0
        %808 = vmatpush1.msra.mxu0 0.0
        %809 = vmatprep.subr.mxu0 0.0
        %810 = vmatpush1.msra.mxu0 0.0
        %811 = vmatprep.subr.mxu0 0.0
        %812 = vmatpush1.msra.mxu0 0.0
        %813 = vmatprep.subr.mxu0 0.0
        %814 = vmatpush1.msra.mxu0 0.0
        %815 = vmatprep.subr.mxu0 0.0
        %816 = vmatpush1.msra.mxu0 0.0
        %817 = vmatprep.subr.mxu0 0.0
        %818 = vmatpush1.msra.mxu0 0.0
        %819 = vmatprep.subr.mxu0 0.0
        %820 = vmatpush1.msra.mxu0 0.0
        %821 = vmatprep.subr.mxu0 0.0
        %822 = vmatpush1.msra.mxu0 0.0
        %823 = vmatprep.subr.mxu0 0.0
        %824 = vmatpush1.msra.mxu0 0.0
        %825 = vmatprep.subr.mxu0 0.0
        %826 = vmatpush1.msra.mxu0 0.0
        %827 = vmatprep.subr.mxu0 0.0
        %828 = vmatpush1.msra.mxu0 0.0
        %829 = vmatprep.subr.mxu0 0.0
        %830 = vmatpush1.msra.mxu0 0.0
        %831 = vmatprep.subr.mxu0 0.0
        %832 = vmatpush1.msra.mxu0 0.0
        %833 = vmatprep.subr.mxu0 0.0
        %834 = vmatpush1.msra.mxu0 0.0
        %835 = vmatprep.subr.mxu0 0.0
        %836 = vmatpush1.msra.mxu0 0.0
        %837 = vmatprep.subr.mxu0 0.0
        %838 = vmatpush1.msra.mxu0 0.0
        %839 = vmatprep.subr.mxu0 0.0
        %840 = vmatpush1.msra.mxu0 0.0
        %841 = vmatprep.subr.mxu0 0.0
        %842 = vmatpush1.msra.mxu0 0.0
        %843 = vmatprep.subr.mxu0 0.0
        %844 = vmatpush1.msra.mxu0 0.0
        %845 = vmatprep.subr.mxu0 0.0
        %846 = vmatpush1.msra.mxu0 0.0
        %847 = vmatprep.subr.mxu0 0.0
        %848 = vmatpush1.msra.mxu0 0.0
        %849 = vmatprep.subr.mxu0 0.0
        %850 = vmatpush1.msra.mxu0 0.0
        %851 = vmatprep.subr.mxu0 0.0
        %852 = vmatpush1.msra.mxu0 0.0
        %853 = vmatprep.subr.mxu0 0.0
        %854 = vmatpush1.msra.mxu0 0.0
        %855 = vmatprep.mubr.f32.mxu0 0.0
        %856 = vmatmul.mubr.f32.gmra.mrb[0].mxu0 %v789
        %v857 = vpop.f32.mrb[0].mxu0
        %v858 = vadd.f32 %v785, %v857
        %v859 = vpop.f32.mrb[0].mxu0
        %860 = vdwg.mxu0
        %v861 = vmul.f32 %v858, 0.35355338
        %v862 = vld [vmem:[#allocation2] sm:$0xff]
        %v863 = vld [vmem:[#allocation3] sm:$0xff]
        %vm864 = vcmask 64512
        %v866 = vsel %vm864, %v861, 0
        %v869 = vsel %vm864, %v862, 0
        %871 = vmatprep.subr.mxu0 0.0
        %872 = vmatpush1.xpose.msra.mxu0 %v869
        %873 = vmatprep.subr.mxu0 0.0
        %874 = vmatpush1.xpose.msra.mxu0 0.0
        %875 = vmatprep.subr.mxu0 0.0
        %876 = vmatpush1.xpose.msra.mxu0 0.0
        %877 = vmatprep.subr.mxu0 0.0
        %878 = vmatpush1.xpose.msra.mxu0 0.0
        %879 = vmatprep.subr.mxu0 0.0
        %880 = vmatpush1.xpose.msra.mxu0 0.0
        %881 = vmatprep.subr.mxu0 0.0
        %882 = vmatpush1.xpose.msra.mxu0 0.0
        %883 = vmatprep.subr.mxu0 0.0
        %884 = vmatpush1.xpose.msra.mxu0 0.0
        %885 = vmatprep.subr.mxu0 0.0
        %886 = vmatpush1.xpose.msra.mxu0 0.0
        %887 = vmatprep.subr.mxu0 0.0
        %888 = vmatpush1.xpose.msra.mxu0 0.0
        %889 = vmatprep.subr.mxu0 0.0
        %890 = vmatpush1.xpose.msra.mxu0 0.0
        %891 = vmatprep.subr.mxu0 0.0
        %892 = vmatpush1.xpose.msra.mxu0 0.0
        %893 = vmatprep.subr.mxu0 0.0
        %894 = vmatpush1.xpose.msra.mxu0 0.0
        %895 = vmatprep.subr.mxu0 0.0
        %896 = vmatpush1.xpose.msra.mxu0 0.0
        %897 = vmatprep.subr.mxu0 0.0
        %898 = vmatpush1.xpose.msra.mxu0 0.0
        %899 = vmatprep.subr.mxu0 0.0
        %900 = vmatpush1.xpose.msra.mxu0 0.0
        %901 = vmatprep.subr.mxu0 0.0
        %902 = vmatpush1.xpose.msra.mxu0 0.0
        %903 = vmatprep.subr.mxu0 0.0
        %904 = vmatpush1.xpose.msra.mxu0 0.0
        %905 = vmatprep.subr.mxu0 0.0
        %906 = vmatpush1.xpose.msra.mxu0 0.0
        %907 = vmatprep.subr.mxu0 0.0
        %908 = vmatpush1.xpose.msra.mxu0 0.0
        %909 = vmatprep.subr.mxu0 0.0
        %910 = vmatpush1.xpose.msra.mxu0 0.0
        %911 = vmatprep.subr.mxu0 0.0
        %912 = vmatpush1.xpose.msra.mxu0 0.0
        %913 = vmatprep.subr.mxu0 0.0
        %914 = vmatpush1.xpose.msra.mxu0 0.0
        %915 = vmatprep.subr.mxu0 0.0
        %916 = vmatpush1.xpose.msra.mxu0 0.0
        %917 = vmatprep.subr.mxu0 0.0
        %918 = vmatpush1.xpose.msra.mxu0 0.0
        %919 = vmatprep.subr.mxu0 0.0
        %920 = vmatpush1.xpose.msra.mxu0 0.0
        %921 = vmatprep.subr.mxu0 0.0
        %922 = vmatpush1.xpose.msra.mxu0 0.0
        %923 = vmatprep.subr.mxu0 0.0
        %924 = vmatpush1.xpose.msra.mxu0 0.0
        %925 = vmatprep.subr.mxu0 0.0
        %926 = vmatpush1.xpose.msra.mxu0 0.0
        %927 = vmatprep.subr.mxu0 0.0
        %928 = vmatpush1.xpose.msra.mxu0 0.0
        %929 = vmatprep.subr.mxu0 0.0
        %930 = vmatpush1.xpose.msra.mxu0 0.0
        %931 = vmatprep.subr.mxu0 0.0
        %932 = vmatpush1.xpose.msra.mxu0 0.0
        %933 = vmatprep.subr.mxu0 0.0
        %934 = vmatpush1.xpose.msra.mxu0 0.0
        %935 = vmatprep.mubr.f32.mxu0 0.0
        %936 = vmatmul.mubr.f32.gmra.mrb[0].mxu0 %v866
        %v937 = vpop.f32.mrb[0].mxu0
        %v938 = vadd.f32 0.0, %v937
        %v939 = vpop.f32.mrb[0].mxu0
        %940 = vdwg.mxu0
        %v941 = vsel %vm864, %v938, -inf
        %942 = vmax.xlane.f32.xlu0 %v941
        %v943 = vpop.xlane.xlu0 %942
        %v944 = vsub.f32 %v938, %v943
        %v945 = vmul.f32 %v944, 1.442695
        %v946 = vpow.pop %v945
        %v947 = vsel %vm864, %v946, 0.0
        %948 = vadd.xlane.f32.xlu0 %v947
        %v949 = vpop.xlane.xlu0 %948
        %v950 = vrcp.pop %v949
        %v951 = vmul.f32 %v946, %v950
        %v953 = vsel %vm864, %v951, 0
        %955 = vmatprep.subr.mxu0 0.0
        %956 = vmatpush1.msra.mxu0 %v863
        %957 = vmatprep.subr.mxu0 0.0
        %958 = vmatpush1.msra.mxu0 0.0
        %959 = vmatprep.subr.mxu0 0.0
        %960 = vmatpush1.msra.mxu0 0.0
        %961 = vmatprep.subr.mxu0 0.0
        %962 = vmatpush1.msra.mxu0 0.0
        %963 = vmatprep.subr.mxu0 0.0
        %964 = vmatpush1.msra.mxu0 0.0
        %965 = vmatprep.subr.mxu0 0.0
        %966 = vmatpush1.msra.mxu0 0.0
        %967 = vmatprep.subr.mxu0 0.0
        %968 = vmatpush1.msra.mxu0 0.0
        %969 = vmatprep.subr.mxu0 0.0
        %970 = vmatpush1.msra.mxu0 0.0
        %971 = vmatprep.subr.mxu0 0.0
        %972 = vmatpush1.msra.mxu0 0.0
        %973 = vmatprep.subr.mxu0 0.0
        %974 = vmatpush1.msra.mxu0 0.0
        %975 = vmatprep.subr.mxu0 0.0
        %976 = vmatpush1.msra.mxu0 0.0
        %977 = vmatprep.subr.mxu0 0.0
        %978 = vmatpush1.msra.mxu0 0.0
        %979 = vmatprep.subr.mxu0 0.0
        %980 = vmatpush1.msra.mxu0 0.0
        %981 = vmatprep.subr.mxu0 0.0
        %982 = vmatpush1.msra.mxu0 0.0
        %983 = vmatprep.subr.mxu0 0.0
        %984 = vmatpush1.msra.mxu0 0.0
        %985 = vmatprep.subr.mxu0 0.0
        %986 = vmatpush1.msra.mxu0 0.0
        %987 = vmatprep.subr.mxu0 0.0
        %988 = vmatpush1.msra.mxu0 0.0
        %989 = vmatprep.subr.mxu0 0.0
        %990 = vmatpush1.msra.mxu0 0.0
        %991 = vmatprep.subr.mxu0 0.0
        %992 = vmatpush1.msra.mxu0 0.0
        %993 = vmatprep.subr.mxu0 0.0
        %994 = vmatpush1.msra.mxu0 0.0
        %995 = vmatprep.subr.mxu0 0.0
        %996 = vmatpush1.msra.mxu0 0.0
        %997 = vmatprep.subr.mxu0 0.0
        %998 = vmatpush1.msra.mxu0 0.0
        %999 = vmatprep.subr.mxu0 0.0
        %1000 = vmatpush1.msra.mxu0 0.0
        %1001 = vmatprep.subr.mxu0 0.0
        %1002 = vmatpush1.msra.mxu0 0.0
        %1003 = vmatprep.subr.mxu0 0.0
        %1004 = vmatpush1.msra.mxu0 0.0
        %1005 = vmatprep.subr.mxu0 0.0
        %1006 = vmatpush1.msra.mxu0 0.0
        %1007 = vmatprep.subr.mxu0 0.0
        %1008 = vmatpush1.msra.mxu0 0.0
        %1009 = vmatprep.subr.mxu0 0.0
        %1010 = vmatpush1.msra.mxu0 0.0
        %1011 = vmatprep.subr.mxu0 0.0
        %1012 = vmatpush1.msra.mxu0 0.0
        %1013 = vmatprep.subr.mxu0 0.0
        %1014 = vmatpush1.msra.mxu0 0.0
        %1015 = vmatprep.subr.mxu0 0.0
        %1016 = vmatpush1.msra.mxu0 0.0
        %1017 = vmatprep.subr.mxu0 0.0
        %1018 = vmatpush1.msra.mxu0 0.0
        %1019 = vmatprep.mubr.f32.mxu0 0.0
        %1020 = vmatmul.mubr.f32.gmra.mrb[0].mxu0 %v953
        %v1021 = vpop.f32.mrb[0].mxu0
        %v1022 = vadd.f32 0.0, %v1021
        %v1023 = vpop.f32.mrb[0].mxu0
        %1024 = vdwg.mxu0
        %1025 = vrot.lane.b32.xlu0 %v861, 120
        %v1026 = vpop.permute.xlu0 %1025
        %1027 = vrot.lane.b32.xlu0 %v862, 120
        %v1028 = vpop.permute.xlu0 %1027
        %v1029 = vsel %vm864, %v1026, 0
        %v1031 = vsel %vm864, %v1028, 0
        %1033 = vmatprep.subr.mxu0 0.0
        %1034 = vmatpush1.xpose.msra.mxu0 %v1031
        %1035 = vmatprep.subr.mxu0 0.0
        %1036 = vmatpush1.xpose.msra.mxu0 0.0
        %1037 = vmatprep.subr.mxu0 0.0
        %1038 = vmatpush1.xpose.msra.mxu0 0.0
        %1039 = vmatprep.subr.mxu0 0.0
        %1040 = vmatpush1.xpose.msra.mxu0 0.0
        %1041 = vmatprep.subr.mxu0 0.0
        %1042 = vmatpush1.xpose.msra.mxu0 0.0
        %1043 = vmatprep.subr.mxu0 0.0
        %1044 = vmatpush1.xpose.msra.mxu0 0.0
        %1045 = vmatprep.subr.mxu0 0.0
        %1046 = vmatpush1.xpose.msra.mxu0 0.0
        %1047 = vmatprep.subr.mxu0 0.0
        %1048 = vmatpush1.xpose.msra.mxu0 0.0
        %1049 = vmatprep.subr.mxu0 0.0
        %1050 = vmatpush1.xpose.msra.mxu0 0.0
        %1051 = vmatprep.subr.mxu0 0.0
        %1052 = vmatpush1.xpose.msra.mxu0 0.0
        %1053 = vmatprep.subr.mxu0 0.0
        %1054 = vmatpush1.xpose.msra.mxu0 0.0
        %1055 = vmatprep.subr.mxu0 0.0
        %1056 = vmatpush1.xpose.msra.mxu0 0.0
        %1057 = vmatprep.subr.mxu0 0.0
        %1058 = vmatpush1.xpose.msra.mxu0 0.0
        %1059 = vmatprep.subr.mxu0 0.0
        %1060 = vmatpush1.xpose.msra.mxu0 0.0
        %1061 = vmatprep.subr.mxu0 0.0
        %1062 = vmatpush1.xpose.msra.mxu0 0.0
        %1063 = vmatprep.subr.mxu0 0.0
        %1064 = vmatpush1.xpose.msra.mxu0 0.0
        %1065 = vmatprep.subr.mxu0 0.0
        %1066 = vmatpush1.xpose.msra.mxu0 0.0
        %1067 = vmatprep.subr.mxu0 0.0
        %1068 = vmatpush1.xpose.msra.mxu0 0.0
        %1069 = vmatprep.subr.mxu0 0.0
        %1070 = vmatpush1.xpose.msra.mxu0 0.0
        %1071 = vmatprep.subr.mxu0 0.0
        %1072 = vmatpush1.xpose.msra.mxu0 0.0
        %1073 = vmatprep.subr.mxu0 0.0
        %1074 = vmatpush1.xpose.msra.mxu0 0.0
        %1075 = vmatprep.subr.mxu0 0.0
        %1076 = vmatpush1.xpose.msra.mxu0 0.0
        %1077 = vmatprep.subr.mxu0 0.0
        %1078 = vmatpush1.xpose.msra.mxu0 0.0
        %1079 = vmatprep.subr.mxu0 0.0
        %1080 = vmatpush1.xpose.msra.mxu0 0.0
        %1081 = vmatprep.subr.mxu0 0.0
        %1082 = vmatpush1.xpose.msra.mxu0 0.0
        %1083 = vmatprep.subr.mxu0 0.0
        %1084 = vmatpush1.xpose.msra.mxu0 0.0
        %1085 = vmatprep.subr.mxu0 0.0
        %1086 = vmatpush1.xpose.msra.mxu0 0.0
        %1087 = vmatprep.subr.mxu0 0.0
        %1088 = vmatpush1.xpose.msra.mxu0 0.0
        %1089 = vmatprep.subr.mxu0 0.0
        %1090 = vmatpush1.xpose.msra.mxu0 0.0
        %1091 = vmatprep.subr.mxu0 0.0
        %1092 = vmatpush1.xpose.msra.mxu0 0.0
        %1093 = vmatprep.subr.mxu0 0.0
        %1094 = vmatpush1.xpose.msra.mxu0 0.0
        %1095 = vmatprep.subr.mxu0 0.0
        %1096 = vmatpush1.xpose.msra.mxu0 0.0
        %1097 = vmatprep.mubr.f32.mxu0 0.0
        %1098 = vmatmul.mubr.f32.gmra.mrb[0].mxu0 %v1029
        %v1099 = vpop.f32.mrb[0].mxu0
        %v1100 = vadd.f32 0.0, %v1099
        %v1101 = vpop.f32.mrb[0].mxu0
        %1102 = vdwg.mxu0
        %v1103 = vsel %vm864, %v1100, -inf
        %1104 = vmax.xlane.f32.xlu0 %v1103
        %v1105 = vpop.xlane.xlu0 %1104
        %v1106 = vsub.f32 %v1100, %v1105
        %v1107 = vmul.f32 %v1106, 1.442695
        %v1108 = vpow.pop %v1107
        %v1109 = vsel %vm864, %v1108, 0.0
        %1110 = vadd.xlane.f32.xlu0 %v1109
        %v1111 = vpop.xlane.xlu0 %1110
        %v1112 = vrcp.pop %v1111
        %v1113 = vmul.f32 %v1108, %v1112
        %1115 = vrot.lane.b32.xlu0 %v863, 120
        %v1116 = vpop.permute.xlu0 %1115
        %v1119 = vsel %vm864, %v1113, 0
        %1121 = vmatprep.subr.mxu0 0.0
        %1122 = vmatpush1.msra.mxu0 %v1116
        %1123 = vmatprep.subr.mxu0 0.0
        %1124 = vmatpush1.msra.mxu0 0.0
        %1125 = vmatprep.subr.mxu0 0.0
        %1126 = vmatpush1.msra.mxu0 0.0
        %1127 = vmatprep.subr.mxu0 0.0
        %1128 = vmatpush1.msra.mxu0 0.0
        %1129 = vmatprep.subr.mxu0 0.0
        %1130 = vmatpush1.msra.mxu0 0.0
        %1131 = vmatprep.subr.mxu0 0.0
        %1132 = vmatpush1.msra.mxu0 0.0
        %1133 = vmatprep.subr.mxu0 0.0
        %1134 = vmatpush1.msra.mxu0 0.0
        %1135 = vmatprep.subr.mxu0 0.0
        %1136 = vmatpush1.msra.mxu0 0.0
        %1137 = vmatprep.subr.mxu0 0.0
        %1138 = vmatpush1.msra.mxu0 0.0
        %1139 = vmatprep.subr.mxu0 0.0
        %1140 = vmatpush1.msra.mxu0 0.0
        %1141 = vmatprep.subr.mxu0 0.0
        %1142 = vmatpush1.msra.mxu0 0.0
        %1143 = vmatprep.subr.mxu0 0.0
        %1144 = vmatpush1.msra.mxu0 0.0
        %1145 = vmatprep.subr.mxu0 0.0
        %1146 = vmatpush1.msra.mxu0 0.0
        %1147 = vmatprep.subr.mxu0 0.0
        %1148 = vmatpush1.msra.mxu0 0.0
        %1149 = vmatprep.subr.mxu0 0.0
        %1150 = vmatpush1.msra.mxu0 0.0
        %1151 = vmatprep.subr.mxu0 0.0
        %1152 = vmatpush1.msra.mxu0 0.0
        %1153 = vmatprep.subr.mxu0 0.0
        %1154 = vmatpush1.msra.mxu0 0.0
        %1155 = vmatprep.subr.mxu0 0.0
        %1156 = vmatpush1.msra.mxu0 0.0
        %1157 = vmatprep.subr.mxu0 0.0
        %1158 = vmatpush1.msra.mxu0 0.0
        %1159 = vmatprep.subr.mxu0 0.0
        %1160 = vmatpush1.msra.mxu0 0.0
        %1161 = vmatprep.subr.mxu0 0.0
        %1162 = vmatpush1.msra.mxu0 0.0
        %1163 = vmatprep.subr.mxu0 0.0
        %1164 = vmatpush1.msra.mxu0 0.0
        %1165 = vmatprep.subr.mxu0 0.0
        %1166 = vmatpush1.msra.mxu0 0.0
        %1167 = vmatprep.subr.mxu0 0.0
        %1168 = vmatpush1.msra.mxu0 0.0
        %1169 = vmatprep.subr.mxu0 0.0
        %1170 = vmatpush1.msra.mxu0 0.0
        %1171 = vmatprep.subr.mxu0 0.0
        %1172 = vmatpush1.msra.mxu0 0.0
        %1173 = vmatprep.subr.mxu0 0.0
        %1174 = vmatpush1.msra.mxu0 0.0
        %1175 = vmatprep.subr.mxu0 0.0
        %1176 = vmatpush1.msra.mxu0 0.0
        %1177 = vmatprep.subr.mxu0 0.0
        %1178 = vmatpush1.msra.mxu0 0.0
        %1179 = vmatprep.subr.mxu0 0.0
        %1180 = vmatpush1.msra.mxu0 0.0
        %1181 = vmatprep.subr.mxu0 0.0
        %1182 = vmatpush1.msra.mxu0 0.0
        %1183 = vmatprep.subr.mxu0 0.0
        %1184 = vmatpush1.msra.mxu0 0.0
        %1185 = vmatprep.mubr.f32.mxu0 0.0
        %1186 = vmatmul.mubr.f32.gmra.mrb[0].mxu0 %v1119
        %v1187 = vpop.f32.mrb[0].mxu0
        %v1188 = vadd.f32 0.0, %v1187
        %v1189 = vpop.f32.mrb[0].mxu0
        %1190 = vdwg.mxu0
        %1191 = vrot.lane.b32.xlu0 %v861, 112
        %v1192 = vpop.permute.xlu0 %1191
        %1193 = vrot.lane.b32.xlu0 %v862, 112
        %v1194 = vpop.permute.xlu0 %1193
        %v1195 = vsel %vm864, %v1192, 0
        %v1197 = vsel %vm864, %v1194, 0
        %1199 = vmatprep.subr.mxu0 0.0
        %1200 = vmatpush1.xpose.msra.mxu0 %v1197
        %1201 = vmatprep.subr.mxu0 0.0
        %1202 = vmatpush1.xpose.msra.mxu0 0.0
        %1203 = vmatprep.subr.mxu0 0.0
        %1204 = vmatpush1.xpose.msra.mxu0 0.0
        %1205 = vmatprep.subr.mxu0 0.0
        %1206 = vmatpush1.xpose.msra.mxu0 0.0
        %1207 = vmatprep.subr.mxu0 0.0
        %1208 = vmatpush1.xpose.msra.mxu0 0.0
        %1209 = vmatprep.subr.mxu0 0.0
        %1210 = vmatpush1.xpose.msra.mxu0 0.0
        %1211 = vmatprep.subr.mxu0 0.0
        %1212 = vmatpush1.xpose.msra.mxu0 0.0
        %1213 = vmatprep.subr.mxu0 0.0
        %1214 = vmatpush1.xpose.msra.mxu0 0.0
        %1215 = vmatprep.subr.mxu0 0.0
        %1216 = vmatpush1.xpose.msra.mxu0 0.0
        %1217 = vmatprep.subr.mxu0 0.0
        %1218 = vmatpush1.xpose.msra.mxu0 0.0
        %1219 = vmatprep.subr.mxu0 0.0
        %1220 = vmatpush1.xpose.msra.mxu0 0.0
        %1221 = vmatprep.subr.mxu0 0.0
        %1222 = vmatpush1.xpose.msra.mxu0 0.0
        %1223 = vmatprep.subr.mxu0 0.0
        %1224 = vmatpush1.xpose.msra.mxu0 0.0
        %1225 = vmatprep.subr.mxu0 0.0
        %1226 = vmatpush1.xpose.msra.mxu0 0.0
        %1227 = vmatprep.subr.mxu0 0.0
        %1228 = vmatpush1.xpose.msra.mxu0 0.0
        %1229 = vmatprep.subr.mxu0 0.0
        %1230 = vmatpush1.xpose.msra.mxu0 0.0
        %1231 = vmatprep.subr.mxu0 0.0
        %1232 = vmatpush1.xpose.msra.mxu0 0.0
        %1233 = vmatprep.subr.mxu0 0.0
        %1234 = vmatpush1.xpose.msra.mxu0 0.0
        %1235 = vmatprep.subr.mxu0 0.0
        %1236 = vmatpush1.xpose.msra.mxu0 0.0
        %1237 = vmatprep.subr.mxu0 0.0
        %1238 = vmatpush1.xpose.msra.mxu0 0.0
        %1239 = vmatprep.subr.mxu0 0.0
        %1240 = vmatpush1.xpose.msra.mxu0 0.0
        %1241 = vmatprep.subr.mxu0 0.0
        %1242 = vmatpush1.xpose.msra.mxu0 0.0
        %1243 = vmatprep.subr.mxu0 0.0
        %1244 = vmatpush1.xpose.msra.mxu0 0.0
        %1245 = vmatprep.subr.mxu0 0.0
        %1246 = vmatpush1.xpose.msra.mxu0 0.0
        %1247 = vmatprep.subr.mxu0 0.0
        %1248 = vmatpush1.xpose.msra.mxu0 0.0
        %1249 = vmatprep.subr.mxu0 0.0
        %1250 = vmatpush1.xpose.msra.mxu0 0.0
        %1251 = vmatprep.subr.mxu0 0.0
        %1252 = vmatpush1.xpose.msra.mxu0 0.0
        %1253 = vmatprep.subr.mxu0 0.0
        %1254 = vmatpush1.xpose.msra.mxu0 0.0
        %1255 = vmatprep.subr.mxu0 0.0
        %1256 = vmatpush1.xpose.msra.mxu0 0.0
        %1257 = vmatprep.subr.mxu0 0.0
        %1258 = vmatpush1.xpose.msra.mxu0 0.0
        %1259 = vmatprep.subr.mxu0 0.0
        %1260 = vmatpush1.xpose.msra.mxu0 0.0
        %1261 = vmatprep.subr.mxu0 0.0
        %1262 = vmatpush1.xpose.msra.mxu0 0.0
        %1263 = vmatprep.mubr.f32.mxu0 0.0
        %1264 = vmatmul.mubr.f32.gmra.mrb[0].mxu0 %v1195
        %v1265 = vpop.f32.mrb[0].mxu0
        %v1266 = vadd.f32 0.0, %v1265
        %v1267 = vpop.f32.mrb[0].mxu0
        %1268 = vdwg.mxu0
        %v1269 = vsel %vm864, %v1266, -inf
        %1270 = vmax.xlane.f32.xlu0 %v1269
        %v1271 = vpop.xlane.xlu0 %1270
        %v1272 = vsub.f32 %v1266, %v1271
        %v1273 = vmul.f32 %v1272, 1.442695
        %v1274 = vpow.pop %v1273
        %v1275 = vsel %vm864, %v1274, 0.0
        %1276 = vadd.xlane.f32.xlu0 %v1275
        %v1277 = vpop.xlane.xlu0 %1276
        %v1278 = vrcp.pop %v1277
        %v1279 = vmul.f32 %v1274, %v1278
        %1280 = vrot.lane.b32.xlu0 %v863, 112
        %v1281 = vpop.permute.xlu0 %1280
        %v1284 = vsel %vm864, %v1279, 0
        %1286 = vmatprep.subr.mxu0 0.0
        %1287 = vmatpush1.msra.mxu0 %v1281
        %1288 = vmatprep.subr.mxu0 0.0
        %1289 = vmatpush1.msra.mxu0 0.0
        %1290 = vmatprep.subr.mxu0 0.0
        %1291 = vmatpush1.msra.mxu0 0.0
        %1292 = vmatprep.subr.mxu0 0.0
        %1293 = vmatpush1.msra.mxu0 0.0
        %1294 = vmatprep.subr.mxu0 0.0
        %1295 = vmatpush1.msra.mxu0 0.0
        %1296 = vmatprep.subr.mxu0 0.0
        %1297 = vmatpush1.msra.mxu0 0.0
        %1298 = vmatprep.subr.mxu0 0.0
        %1299 = vmatpush1.msra.mxu0 0.0
        %1300 = vmatprep.subr.mxu0 0.0
        %1301 = vmatpush1.msra.mxu0 0.0
        %1302 = vmatprep.subr.mxu0 0.0
        %1303 = vmatpush1.msra.mxu0 0.0
        %1304 = vmatprep.subr.mxu0 0.0
        %1305 = vmatpush1.msra.mxu0 0.0
        %1306 = vmatprep.subr.mxu0 0.0
        %1307 = vmatpush1.msra.mxu0 0.0
        %1308 = vmatprep.subr.mxu0 0.0
        %1309 = vmatpush1.msra.mxu0 0.0
        %1310 = vmatprep.subr.mxu0 0.0
        %1311 = vmatpush1.msra.mxu0 0.0
        %1312 = vmatprep.subr.mxu0 0.0
        %1313 = vmatpush1.msra.mxu0 0.0
        %1314 = vmatprep.subr.mxu0 0.0
        %1315 = vmatpush1.msra.mxu0 0.0
        %1316 = vmatprep.subr.mxu0 0.0
        %1317 = vmatpush1.msra.mxu0 0.0
        %1318 = vmatprep.subr.mxu0 0.0
        %1319 = vmatpush1.msra.mxu0 0.0
        %1320 = vmatprep.subr.mxu0 0.0
        %1321 = vmatpush1.msra.mxu0 0.0
        %1322 = vmatprep.subr.mxu0 0.0
        %1323 = vmatpush1.msra.mxu0 0.0
        %1324 = vmatprep.subr.mxu0 0.0
        %1325 = vmatpush1.msra.mxu0 0.0
        %1326 = vmatprep.subr.mxu0 0.0
        %1327 = vmatpush1.msra.mxu0 0.0
        %1328 = vmatprep.subr.mxu0 0.0
        %1329 = vmatpush1.msra.mxu0 0.0
        %1330 = vmatprep.subr.mxu0 0.0
        %1331 = vmatpush1.msra.mxu0 0.0
        %1332 = vmatprep.subr.mxu0 0.0
        %1333 = vmatpush1.msra.mxu0 0.0
        %1334 = vmatprep.subr.mxu0 0.0
        %1335 = vmatpush1.msra.mxu0 0.0
        %1336 = vmatprep.subr.mxu0 0.0
        %1337 = vmatpush1.msra.mxu0 0.0
        %1338 = vmatprep.subr.mxu0 0.0
        %1339 = vmatpush1.msra.mxu0 0.0
        %1340 = vmatprep.subr.mxu0 0.0
        %1341 = vmatpush1.msra.mxu0 0.0
        %1342 = vmatprep.subr.mxu0 0.0
        %1343 = vmatpush1.msra.mxu0 0.0
        %1344 = vmatprep.subr.mxu0 0.0
        %1345 = vmatpush1.msra.mxu0 0.0
        %1346 = vmatprep.subr.mxu0 0.0
        %1347 = vmatpush1.msra.mxu0 0.0
        %1348 = vmatprep.subr.mxu0 0.0
        %1349 = vmatpush1.msra.mxu0 0.0
        %1350 = vmatprep.mubr.f32.mxu0 0.0
        %1351 = vmatmul.mubr.f32.gmra.mrb[0].mxu0 %v1284
        %v1352 = vpop.f32.mrb[0].mxu0
        %v1353 = vadd.f32 0.0, %v1352
        %v1354 = vpop.f32.mrb[0].mxu0
        %1355 = vdwg.mxu0
        %1356 = vrot.lane.b32.xlu0 %v861, 104
        %v1357 = vpop.permute.xlu0 %1356
        %1358 = vrot.lane.b32.xlu0 %v862, 104
        %v1359 = vpop.permute.xlu0 %1358
        %v1360 = vsel %vm864, %v1357, 0
        %v1362 = vsel %vm864, %v1359, 0
        %1364 = vmatprep.subr.mxu0 0.0
        %1365 = vmatpush1.xpose.msra.mxu0 %v1362
        %1366 = vmatprep.subr.mxu0 0.0
        %1367 = vmatpush1.xpose.msra.mxu0 0.0
        %1368 = vmatprep.subr.mxu0 0.0
        %1369 = vmatpush1.xpose.msra.mxu0 0.0
        %1370 = vmatprep.subr.mxu0 0.0
        %1371 = vmatpush1.xpose.msra.mxu0 0.0
        %1372 = vmatprep.subr.mxu0 0.0
        %1373 = vmatpush1.xpose.msra.mxu0 0.0
        %1374 = vmatprep.subr.mxu0 0.0
        %1375 = vmatpush1.xpose.msra.mxu0 0.0
        %1376 = vmatprep.subr.mxu0 0.0
        %1377 = vmatpush1.xpose.msra.mxu0 0.0
        %1378 = vmatprep.subr.mxu0 0.0
        %1379 = vmatpush1.xpose.msra.mxu0 0.0
        %1380 = vmatprep.subr.mxu0 0.0
        %1381 = vmatpush1.xpose.msra.mxu0 0.0
        %1382 = vmatprep.subr.mxu0 0.0
        %1383 = vmatpush1.xpose.msra.mxu0 0.0
        %1384 = vmatprep.subr.mxu0 0.0
        %1385 = vmatpush1.xpose.msra.mxu0 0.0
        %1386 = vmatprep.subr.mxu0 0.0
        %1387 = vmatpush1.xpose.msra.mxu0 0.0
        %1388 = vmatprep.subr.mxu0 0.0
        %1389 = vmatpush1.xpose.msra.mxu0 0.0
        %1390 = vmatprep.subr.mxu0 0.0
        %1391 = vmatpush1.xpose.msra.mxu0 0.0
        %1392 = vmatprep.subr.mxu0 0.0
        %1393 = vmatpush1.xpose.msra.mxu0 0.0
        %1394 = vmatprep.subr.mxu0 0.0
        %1395 = vmatpush1.xpose.msra.mxu0 0.0
        %1396 = vmatprep.subr.mxu0 0.0
        %1397 = vmatpush1.xpose.msra.mxu0 0.0
        %1398 = vmatprep.subr.mxu0 0.0
        %1399 = vmatpush1.xpose.msra.mxu0 0.0
        %1400 = vmatprep.subr.mxu0 0.0
        %1401 = vmatpush1.xpose.msra.mxu0 0.0
        %1402 = vmatprep.subr.mxu0 0.0
        %1403 = vmatpush1.xpose.msra.mxu0 0.0
        %1404 = vmatprep.subr.mxu0 0.0
        %1405 = vmatpush1.xpose.msra.mxu0 0.0
        %1406 = vmatprep.subr.mxu0 0.0
        %1407 = vmatpush1.xpose.msra.mxu0 0.0
        %1408 = vmatprep.subr.mxu0 0.0
        %1409 = vmatpush1.xpose.msra.mxu0 0.0
        %1410 = vmatprep.subr.mxu0 0.0
        %1411 = vmatpush1.xpose.msra.mxu0 0.0
        %1412 = vmatprep.subr.mxu0 0.0
        %1413 = vmatpush1.xpose.msra.mxu0 0.0
        %1414 = vmatprep.subr.mxu0 0.0
        %1415 = vmatpush1.xpose.msra.mxu0 0.0
        %1416 = vmatprep.subr.mxu0 0.0
        %1417 = vmatpush1.xpose.msra.mxu0 0.0
        %1418 = vmatprep.subr.mxu0 0.0
        %1419 = vmatpush1.xpose.msra.mxu0 0.0
        %1420 = vmatprep.subr.mxu0 0.0
        %1421 = vmatpush1.xpose.msra.mxu0 0.0
        %1422 = vmatprep.subr.mxu0 0.0
        %1423 = vmatpush1.xpose.msra.mxu0 0.0
        %1424 = vmatprep.subr.mxu0 0.0
        %1425 = vmatpush1.xpose.msra.mxu0 0.0
        %1426 = vmatprep.subr.mxu0 0.0
        %1427 = vmatpush1.xpose.msra.mxu0 0.0
        %1428 = vmatprep.mubr.f32.mxu0 0.0
        %1429 = vmatmul.mubr.f32.gmra.mrb[0].mxu0 %v1360
        %v1430 = vpop.f32.mrb[0].mxu0
        %v1431 = vadd.f32 0.0, %v1430
        %v1432 = vpop.f32.mrb[0].mxu0
        %1433 = vdwg.mxu0
        %v1434 = vsel %vm864, %v1431, -inf
        %1435 = vmax.xlane.f32.xlu0 %v1434
        %v1436 = vpop.xlane.xlu0 %1435
        %v1437 = vsub.f32 %v1431, %v1436
        %v1438 = vmul.f32 %v1437, 1.442695
        %v1439 = vpow.pop %v1438
        %v1440 = vsel %vm864, %v1439, 0.0
        %1441 = vadd.xlane.f32.xlu0 %v1440
        %v1442 = vpop.xlane.xlu0 %1441
        %v1443 = vrcp.pop %v1442
        %v1444 = vmul.f32 %v1439, %v1443
        %1445 = vrot.lane.b32.xlu0 %v863, 104
        %v1446 = vpop.permute.xlu0 %1445
        %v1449 = vsel %vm864, %v1444, 0
        %1451 = vmatprep.subr.mxu0 0.0
        %1452 = vmatpush1.msra.mxu0 %v1446
        %1453 = vmatprep.subr.mxu0 0.0
        %1454 = vmatpush1.msra.mxu0 0.0
        %1455 = vmatprep.subr.mxu0 0.0
        %1456 = vmatpush1.msra.mxu0 0.0
        %1457 = vmatprep.subr.mxu0 0.0
        %1458 = vmatpush1.msra.mxu0 0.0
        %1459 = vmatprep.subr.mxu0 0.0
        %1460 = vmatpush1.msra.mxu0 0.0
        %1461 = vmatprep.subr.mxu0 0.0
        %1462 = vmatpush1.msra.mxu0 0.0
        %1463 = vmatprep.subr.mxu0 0.0
        %1464 = vmatpush1.msra.mxu0 0.0
        %1465 = vmatprep.subr.mxu0 0.0
        %1466 = vmatpush1.msra.mxu0 0.0
        %1467 = vmatprep.subr.mxu0 0.0
        %1468 = vmatpush1.msra.mxu0 0.0
        %1469 = vmatprep.subr.mxu0 0.0
        %1470 = vmatpush1.msra.mxu0 0.0
        %1471 = vmatprep.subr.mxu0 0.0
        %1472 = vmatpush1.msra.mxu0 0.0
        %1473 = vmatprep.subr.mxu0 0.0
        %1474 = vmatpush1.msra.mxu0 0.0
        %1475 = vmatprep.subr.mxu0 0.0
        %1476 = vmatpush1.msra.mxu0 0.0
        %1477 = vmatprep.subr.mxu0 0.0
        %1478 = vmatpush1.msra.mxu0 0.0
        %1479 = vmatprep.subr.mxu0 0.0
        %1480 = vmatpush1.msra.mxu0 0.0
        %1481 = vmatprep.subr.mxu0 0.0
        %1482 = vmatpush1.msra.mxu0 0.0
        %1483 = vmatprep.subr.mxu0 0.0
        %1484 = vmatpush1.msra.mxu0 0.0
        %1485 = vmatprep.subr.mxu0 0.0
        %1486 = vmatpush1.msra.mxu0 0.0
        %1487 = vmatprep.subr.mxu0 0.0
        %1488 = vmatpush1.msra.mxu0 0.0
        %1489 = vmatprep.subr.mxu0 0.0
        %1490 = vmatpush1.msra.mxu0 0.0
        %1491 = vmatprep.subr.mxu0 0.0
        %1492 = vmatpush1.msra.mxu0 0.0
        %1493 = vmatprep.subr.mxu0 0.0
        %1494 = vmatpush1.msra.mxu0 0.0
        %1495 = vmatprep.subr.mxu0 0.0
        %1496 = vmatpush1.msra.mxu0 0.0
        %1497 = vmatprep.subr.mxu0 0.0
        %1498 = vmatpush1.msra.mxu0 0.0
        %1499 = vmatprep.subr.mxu0 0.0
        %1500 = vmatpush1.msra.mxu0 0.0
        %1501 = vmatprep.subr.mxu0 0.0
        %1502 = vmatpush1.msra.mxu0 0.0
        %1503 = vmatprep.subr.mxu0 0.0
        %1504 = vmatpush1.msra.mxu0 0.0
        %1505 = vmatprep.subr.mxu0 0.0
        %1506 = vmatpush1.msra.mxu0 0.0
        %1507 = vmatprep.subr.mxu0 0.0
        %1508 = vmatpush1.msra.mxu0 0.0
        %1509 = vmatprep.subr.mxu0 0.0
        %1510 = vmatpush1.msra.mxu0 0.0
        %1511 = vmatprep.subr.mxu0 0.0
        %1512 = vmatpush1.msra.mxu0 0.0
        %1513 = vmatprep.subr.mxu0 0.0
        %1514 = vmatpush1.msra.mxu0 0.0
        %1515 = vmatprep.mubr.f32.mxu0 0.0
        %1516 = vmatmul.mubr.f32.gmra.mrb[0].mxu0 %v1449
        %v1517 = vpop.f32.mrb[0].mxu0
        %v1518 = vadd.f32 0.0, %v1517
        %v1519 = vpop.f32.mrb[0].mxu0
        %1520 = vdwg.mxu0
        %1522 = vrot.lane.b32.xlu0 %v1188, 8
        %v1523 = vpop.permute.xlu0 %1522
        %1526 = vrot.lane.b32.xlu0 %v1353, 16
        %v1527 = vpop.permute.xlu0 %1526
        %1530 = vrot.lane.b32.xlu0 %v1518, 24
        %v1531 = vpop.permute.xlu0 %1530
        %v1533 = vsel %vm864, %v1022, %v1523
        %vm1534 = vcmask 130048
        %v1535 = vsel %vm1534, %v1533, %v1527
        %vm1536 = vcmask 195584
        %v1537 = vsel %vm1536, %v1535, %v1531
        %1538 = vst.msk [vmem:[#allocation4] sm:$0xff] %vm787, %v1537
        %v1539 = vld [vmem:[#allocation4] sm:$0xff]
        %v1540 = vld [vmem:[#allocation20] sm:$0xff]
        %v1541 = vld [vmem:[#allocation20 + $0x8] sm:$0xff]
        %v1542 = vld [vmem:[#allocation20 + $0x10] sm:$0xff]
        %v1543 = vld [vmem:[#allocation20 + $0x18] sm:$0xff]
        %v1544 = vld [vmem:[#allocation22] sm:$0x1]
        %v1546 = vlaneseq
        %v1547 = vshrl.u32 %v1546, 7
        %v1548 = vsub.s32 0, %v1547
        %v1549 = vrot.slane %v1544, %v1548
        %v1552 = vsel %vm787, %v1539, 0
        %1554 = vmatprep.subr.mxu0 0.0
        %1555 = vmatpush1.msra.mxu0 %v1540
        %1556 = vmatprep.subr.mxu0 0.0
        %1557 = vmatpush1.msra.mxu0 %v1541
        %1558 = vmatprep.subr.mxu0 0.0
        %1559 = vmatpush1.msra.mxu0 %v1542
        %1560 = vmatprep.subr.mxu0 0.0
        %1561 = vmatpush1.msra.mxu0 %v1543
        %1562 = vmatprep.subr.mxu0 0.0
        %1563 = vmatpush1.msra.mxu0 0.0
        %1564 = vmatprep.subr.mxu0 0.0
        %1565 = vmatpush1.msra.mxu0 0.0
        %1566 = vmatprep.subr.mxu0 0.0
        %1567 = vmatpush1.msra.mxu0 0.0
        %1568 = vmatprep.subr.mxu0 0.0
        %1569 = vmatpush1.msra.mxu0 0.0
        %1570 = vmatprep.subr.mxu0 0.0
        %1571 = vmatpush1.msra.mxu0 0.0
        %1572 = vmatprep.subr.mxu0 0.0
        %1573 = vmatpush1.msra.mxu0 0.0
        %1574 = vmatprep.subr.mxu0 0.0
        %1575 = vmatpush1.msra.mxu0 0.0
        %1576 = vmatprep.subr.mxu0 0.0
        %1577 = vmatpush1.msra.mxu0 0.0
        %1578 = vmatprep.subr.mxu0 0.0
        %1579 = vmatpush1.msra.mxu0 0.0
        %1580 = vmatprep.subr.mxu0 0.0
        %1581 = vmatpush1.msra.mxu0 0.0
        %1582 = vmatprep.subr.mxu0 0.0
        %1583 = vmatpush1.msra.mxu0 0.0
        %1584 = vmatprep.subr.mxu0 0.0
        %1585 = vmatpush1.msra.mxu0 0.0
        %1586 = vmatprep.subr.mxu0 0.0
        %1587 = vmatpush1.msra.mxu0 0.0
        %1588 = vmatprep.subr.mxu0 0.0
        %1589 = vmatpush1.msra.mxu0 0.0
        %1590 = vmatprep.subr.mxu0 0.0
        %1591 = vmatpush1.msra.mxu0 0.0
        %1592 = vmatprep.subr.mxu0 0.0
        %1593 = vmatpush1.msra.mxu0 0.0
        %1594 = vmatprep.subr.mxu0 0.0
        %1595 = vmatpush1.msra.mxu0 0.0
        %1596 = vmatprep.subr.mxu0 0.0
        %1597 = vmatpush1.msra.mxu0 0.0
        %1598 = vmatprep.subr.mxu0 0.0
        %1599 = vmatpush1.msra.mxu0 0.0
        %1600 = vmatprep.subr.mxu0 0.0
        %1601 = vmatpush1.msra.mxu0 0.0
        %1602 = vmatprep.subr.mxu0 0.0
        %1603 = vmatpush1.msra.mxu0 0.0
        %1604 = vmatprep.subr.mxu0 0.0
        %1605 = vmatpush1.msra.mxu0 0.0
        %1606 = vmatprep.subr.mxu0 0.0
        %1607 = vmatpush1.msra.mxu0 0.0
        %1608 = vmatprep.subr.mxu0 0.0
        %1609 = vmatpush1.msra.mxu0 0.0
        %1610 = vmatprep.subr.mxu0 0.0
        %1611 = vmatpush1.msra.mxu0 0.0
        %1612 = vmatprep.subr.mxu0 0.0
        %1613 = vmatpush1.msra.mxu0 0.0
        %1614 = vmatprep.subr.mxu0 0.0
        %1615 = vmatpush1.msra.mxu0 0.0
        %1616 = vmatprep.subr.mxu0 0.0
        %1617 = vmatpush1.msra.mxu0 0.0
        %1618 = vmatprep.mubr.f32.mxu0 0.0
        %1619 = vmatmul.mubr.f32.gmra.mrb[0].mxu0 %v1552
        %v1620 = vpop.f32.mrb[0].mxu0
        %v1621 = vadd.f32 %v1549, %v1620
        %v1622 = vpop.f32.mrb[0].mxu0
        %1623 = vdwg.mxu0
        %1624 = vst.msk [vmem:[%s597] sm:$0xff] %vm787, %v1621
        %s1625 = sand.u32 %s305, 1
        %s1626 = scalar_lea.sflag [#allocation7], %s1625
        %s1627 = sand.u32 %s305, 1
        %s1628 = smul.addr %s1627, 8
        %s1629 = scalar_lea.vmem [#allocation23], %s1628
        // Predicated region
        $region113: #{tpu_custom_call.1} parent=63 // pred_check
          %p1630 = pneg %p315
        $region114: #{tpu_custom_call.1} parent=63 // pred_check_branch
          %1632 = sbr.rel (%p1630) target = $region116
        $region115: #{tpu_custom_call.1} parent=63 // pred_region
          %s1634 = ssub.s32 128, 128
          %1635 = vsyncadd %s1626, %s1634
          %s1636 = sadd.s32 %s40, %s39
          %s1637 = smul.addr %s1636, 128
          %s1638 = scalar_lea.hbm %s11, %s1637
          %s1640 = sshll.u32 %s1629, 4
          %s1641 = int_to_ptr.vmem [resolvable:$true] %s1640
          %1643 = dma.vmem_to_hbm [thread:$0]  %s1641, 128, %s1638, %s1626
        $region116: #{tpu_custom_call.1} parent=63 // pred_fallthru
          _
      $region64: #{tpu_custom_call.1} parent=5 // pred_fallthru
        _
      %p1644 = scmp.le.s32.totalorder 2, %s30
      // Predicated region
      $region117: #{tpu_custom_call.1} parent=5 // pred_check
        %p1645 = pneg %p1644
      $region118: #{tpu_custom_call.1} parent=5 // pred_check_branch
        %1647 = sbr.rel (%p1645) target = $region120
      $region119: #{tpu_custom_call.1} parent=5 // pred_region
        %s1648 = ssub.s32 %s30, 2
        // Predicated region
        $region121: #{tpu_custom_call.1} parent=119 // pred_check
          %p1649 = pneg %p321
        $region122: #{tpu_custom_call.1} parent=119 // pred_check_branch
          %1651 = sbr.rel (%p1649) target = $region124
        $region123: #{tpu_custom_call.1} parent=119 // pred_region
          %s1652 = sand.u32 %s306, 1
          %s1653 = scalar_lea.sflag [#allocation7], %s1652
          %s1654 = sand.u32 %s306, 1
          %s1655 = smul.addr %s1654, 8
          %s1656 = scalar_lea.vmem [#allocation23], %s1655
          %1657 = dma.done %s1653, 128
        $region124: #{tpu_custom_call.1} parent=119 // pred_fallthru
          _
      $region120: #{tpu_custom_call.1} parent=5 // pred_fallthru
        _
    $region6: #{tpu_custom_call.1} parent=1 // loop_footer
      %s34 = sadd.s32 1, %s30
    $region7: #{tpu_custom_call.1} parent=1 // loop_footer_branch
      %29 = sbr.rel target = $region3
    $region8: #{tpu_custom_call.1} parent=1 // loop_exit
      _
    %1658 = vsyncpa [#allocation6], 1
    %s1659 = scalar_lea.sflag [#allocation6], 1
    %1660 = vsyncpa %s1659, 1
    %1661 = vsyncpa [#allocation9], 1
    %s1662 = scalar_lea.sflag [#allocation9], 1
    %1663 = vsyncpa %s1662, 1
    %1664 = vsyncpa [#allocation12], 1
    %1665 = vsyncpa [#allocation15], 1
    %1666 = vsyncpa [#allocation18], 1
    %1667 = vsyncpa [#allocation21], 1
    %1668 = vsyncpa [#allocation7], 1
    %s1669 = scalar_lea.sflag [#allocation7], 1
    %1670 = vsyncpa %s1669, 1

</llo_original>
